<compile_context>
chip_gen: v7x
topology: tpu7x:2x2x1
jax: 0.10.0
libtpu: 0.0.40
codegen_flags: <defaults>
</compile_context>

<pallas_src>
import math
from functools import partial

import jax
import jax.numpy as jnp
from jax import lax
from jax.experimental import pallas as pl
from jax.experimental.pallas import tpu as pltpu


# ----------------------------- kernel -------------------------------------- #


def mha_kernel(xq_ref, xk_ref, xv_ref,
               wq_ref, bq_ref, wk_ref, bk_ref, wv_ref, bv_ref,
               wo_ref, bo_ref,
               o_ref,
               k_scr, v_scr, q_scr, ctx_scr,
               *, h, d_k, kv_chunk, compute_dtype):
    bb, q_rows, d = xq_ref.shape
    s_kv = xk_ref.shape[1]
    bh = bb * h
    n_chunks = s_kv // kv_chunk
    f32 = jnp.float32
    exact = jnp.dtype(compute_dtype) == jnp.dtype(jnp.float32)

    def project(x2d, w_ref, b_ref):
        # compute-dtype operands, f32 MXU accumulation, lane-dense (1, D) bias.
        y = jnp.dot(x2d, w_ref[...], preferred_element_type=f32)
        return (y + b_ref[...]).astype(compute_dtype)

    def scatter_heads(y2d, rows, dst):
        # (bb*rows, D) -> head-major scratch dst[b*h + head] = (rows, d_k).
        # One lane slice per (batch, head) per grid step (not per KV chunk).
        for b in range(bb):
            for head in range(h):
                dst[b * h + head] = y2d[b * rows:(b + 1) * rows,
                                        head * d_k:(head + 1) * d_k]

    # --- K/V projections: once per batch block (first Q tile only), stored in
    #     persistent head-major VMEM scratch and reused by every Q tile. ------
    @pl.when(pl.program_id(1) == 0)
    def _():
        xk = xk_ref[...].reshape(bb * s_kv, d)
        xv = xv_ref[...].reshape(bb * s_kv, d)
        scatter_heads(project(xk, wk_ref, bk_ref), s_kv, k_scr)
        scatter_heads(project(xv, wv_ref, bv_ref), s_kv, v_scr)

    # --- Q projection for this Q tile (1/sqrt(d_k) already folded into wq/bq).
    xq = xq_ref[...].reshape(bb * q_rows, d)
    scatter_heads(project(xq, wq_ref, bq_ref), q_rows, q_scr)
    q_heads = q_scr[...]                                    # (bb*h, q_rows, d_k)

    # --- Online-softmax attention over KV chunks, batched over (batch, head).
    def body(c, carry):
        m, l, acc = carry
        start = pl.multiple_of(c * kv_chunk, kv_chunk)
        k_c = k_scr[:, pl.ds(start, kv_chunk), :]           # (bb*h, kv, d_k)
        v_c = v_scr[:, pl.ds(start, kv_chunk), :]
        s = jnp.einsum('bqd,bkd->bqk', q_heads, k_c,
                       preferred_element_type=f32)          # (bb*h, q, kv)
        m_new = jnp.maximum(m, jnp.max(s, axis=-1, keepdims=True))
        alpha = jnp.exp(m - m_new)
        p = jnp.exp(s - m_new)                              # f32 softmax math
        l_new = alpha * l + jnp.sum(p, axis=-1, keepdims=True)
        pv = jnp.einsum('bqk,bkd->bqd', p.astype(compute_dtype), v_c,
                        preferred_element_type=f32)         # (bb*h, q, d_k)
        return m_new, l_new, alpha * acc + pv

    m0 = jnp.full((bh, q_rows, 1), -jnp.inf, f32)
    l0 = jnp.zeros((bh, q_rows, 1), f32)
    acc0 = jnp.zeros((bh, q_rows, d_k), f32)
    m, l, acc = lax.fori_loop(0, n_chunks, body, (m0, l0, acc0),
                              unroll=min(2, n_chunks))

    # Normalization folded once after the PV matmuls.  Approximate reciprocal
    # (EUP slot) only in reduced-precision mode; exact division in f32 mode.
    if exact:
        ctx = acc / l
    else:
        ctx = acc * pl.reciprocal(l, approx=True)
    ctx = ctx.astype(compute_dtype)

    # --- Gather heads into a lane-dense (rows, D) slab via VMEM scratch
    #     (direct per-head stores, no lane-dim concatenates). ----------------
    for b in range(bb):
        for head in range(h):
            ctx_scr[b * q_rows:(b + 1) * q_rows,
                    head * d_k:(head + 1) * d_k] = ctx[b * h + head]

    out = jnp.dot(ctx_scr[...], wo_ref[...], preferred_element_type=f32) + bo_ref[...]
    o_ref[...] = out.reshape(bb, q_rows, d).astype(o_ref.dtype)


# ----------------------------- wrapper -------------------------------------- #


def _largest_divisor_le(n, cap, multiple_of=1):
    best = None
    for cand in range(1, n + 1):
        if cand <= cap and n % cand == 0 and cand % multiple_of == 0:
            best = cand
    return best


def _pick_q_tile(S, target):
    if S <= target:
        return S
    t = _largest_divisor_le(S, target, multiple_of=8)
    return t if t is not None else S          # block must be 8-aligned or == S


def _pick_kv_chunk(S, target):
    if S <= target:
        return S
    t = _largest_divisor_le(S, target, multiple_of=8)
    if t is None:
        t = _largest_divisor_le(S, target, multiple_of=1)
    return t if t is not None else S


def _pick_batch_block(B, S, q_rows, target_rows=512):
    """Divisor of B targeting ~target_rows projection rows per grid step while
    keeping >=2 parallel grid steps (megacore / v7x 2-TC) when possible."""
    if q_rows % 8 != 0 or S % 8 != 0:         # keep in-kernel reshapes trivial
        return 1
    want = max(1, target_rows // max(1, q_rows))
    if B >= 2:
        want = min(want, B // 2)
    best = 1
    for cand in range(1, min(B, want) + 1):
        if B % cand == 0:
            best = cand
    return best


def _round_up(x, m):
    return ((x + m - 1) // m) * m


def _vmem_estimate(bb, S, q_tile, D, h, d_k, kv_chunk, csize, osize):
    dk_pad = _round_up(d_k, 128)
    s_pad = _round_up(S, 8)
    q_pad = _round_up(q_tile, 8)
    kv_pad = _round_up(kv_chunk, 8)
    est = 0
    est += 2 * bb * q_pad * D * csize                 # xq block (double buffer)
    est += 2 * 2 * bb * s_pad * D * csize             # xk + xv blocks
    est += 2 * 4 * D * D * csize                      # 4 weights
    est += 2 * 4 * 8 * D * 4                          # 4 biases (f32)
    est += 2 * bb * q_pad * D * osize                 # output block
    est += 2 * bb * h * s_pad * dk_pad * csize        # K/V head-major scratch
    est += bb * h * q_pad * dk_pad * csize            # Q head-major scratch
    est += bb * q_pad * D * csize                     # ctx scratch
    est += 3 * bb * h * q_pad * kv_pad * 4            # scores / p temporaries
    est += 2 * bb * h * q_pad * dk_pad * 4            # acc temporaries
    est += 2 * bb * max(s_pad, q_pad) * D * 4         # projection temporaries
    return est


def multi_headed_attention(query, key, value, params, *, h,
                           compute_dtype=jnp.bfloat16,
                           q_tile=256, kv_chunk=512, batch_block=None):
    """query/key/value: [B, S, D].  params: dict of (wq,bq,wk,bk,wv,bv,wo,bo)."""
    B, S, D = query.shape
    assert key.shape == (B, S, D) and value.shape == (B, S, D)
    assert D % h == 0
    d_k = D // h
    out_dtype = query.dtype

    q_tile = _pick_q_tile(S, q_tile)
    kv_chunk = _pick_kv_chunk(S, kv_chunk)
    assert S % q_tile == 0 and S % kv_chunk == 0

    if batch_block is None:
        batch_block = _pick_batch_block(B, S, q_tile)
    assert B % batch_block == 0
    bb = batch_block

    scale = 1.0 / math.sqrt(d_k)
    cast = lambda a: a.astype(compute_dtype)
    q_in, k_in, v_in = cast(query), cast(key), cast(value)

    # Fold the 1/sqrt(d_k) softmax scale into the Q projection (weight + bias).
    wq = cast(params["wq"] * scale)
    wk, wv, wo = cast(params["wk"]), cast(params["wv"]), cast(params["wo"])
    bq = (params["bq"] * scale).astype(jnp.float32).reshape(1, D)
    bk = params["bk"].astype(jnp.float32).reshape(1, D)
    bv = params["bv"].astype(jnp.float32).reshape(1, D)
    bo = params["bo"].astype(jnp.float32).reshape(1, D)

    grid = (B // bb, S // q_tile)

    xq_spec = pl.BlockSpec((bb, q_tile, D), lambda i, j: (i, j, 0))
    xkv_spec = pl.BlockSpec((bb, S, D), lambda i, j: (i, 0, 0))
    w_spec = pl.BlockSpec((D, D), lambda i, j: (0, 0))
    b_spec = pl.BlockSpec((1, D), lambda i, j: (0, 0))
    out_spec = pl.BlockSpec((bb, q_tile, D), lambda i, j: (i, j, 0))

    csize = jnp.dtype(compute_dtype).itemsize
    osize = jnp.dtype(out_dtype).itemsize
    est = _vmem_estimate(bb, S, q_tile, D, h, d_k, kv_chunk, csize, osize)
    vmem_limit = int(min(max(16 * 2**20, 2 * est), 64 * 2**20))

    kernel = partial(mha_kernel, h=h, d_k=d_k, kv_chunk=kv_chunk,
                     compute_dtype=compute_dtype)

    return pl.pallas_call(
        kernel,
        out_shape=jax.ShapeDtypeStruct((B, S, D), out_dtype),
        grid_spec=pltpu.PrefetchScalarGridSpec(
            num_scalar_prefetch=0,
            grid=grid,
            in_specs=[xq_spec, xkv_spec, xkv_spec,
                      w_spec, b_spec, w_spec, b_spec,
                      w_spec, b_spec, w_spec, b_spec],
            out_specs=out_spec,
            scratch_shapes=[
                pltpu.VMEM((bb * h, S, d_k), compute_dtype),       # K head-major
                pltpu.VMEM((bb * h, S, d_k), compute_dtype),       # V head-major
                pltpu.VMEM((bb * h, q_tile, d_k), compute_dtype),  # Q head-major
                pltpu.VMEM((bb * q_tile, D), compute_dtype),       # ctx slab
            ],
        ),
        compiler_params=pltpu.CompilerParams(
            dimension_semantics=("parallel", "arbitrary"),
            vmem_limit_bytes=vmem_limit,
        ),
    )(q_in, k_in, v_in, wq, bq, wk, bk, wv, bv, wo, bo)


# ----------------------------- reference ------------------------------------ #


def reference_mha(query, key, value, params, *, h):
    """Pure-JAX f32 reference mirroring the PyTorch forward (eval mode)."""
    B, S, D = query.shape
    d_k = D // h

    def lin(x, w, b):
        return x @ w + b

    q = lin(query, params["wq"], params["bq"]).reshape(B, S, h, d_k).transpose(0, 2, 1, 3)
    k = lin(key,   params["wk"], params["bk"]).reshape(B, S, h, d_k).transpose(0, 2, 1, 3)
    v = lin(value, params["wv"], params["bv"]).reshape(B, S, h, d_k).transpose(0, 2, 1, 3)

    scores = jnp.einsum('bhqd,bhkd->bhqk', q, k) / math.sqrt(d_k)
    p = jax.nn.softmax(scores, axis=-1)
    x = jnp.einsum('bhqk,bhkd->bhqd', p, v).transpose(0, 2, 1, 3).reshape(B, S, D)
    return lin(x, params["wo"], params["bo"])


if __name__ == "__main__":
    B, S, D, H = 2, 8, 32, 4

    key = jax.random.PRNGKey(0)
    keys = jax.random.split(key, 16)

    bound = 1.0 / math.sqrt(D)
    params = {
        "wq": jax.random.uniform(keys[0], (D, D), jnp.float32, -bound, bound),
        "bq": jax.random.uniform(keys[1], (D,), jnp.float32, -bound, bound),
        "wk": jax.random.uniform(keys[2], (D, D), jnp.float32, -bound, bound),
        "bk": jax.random.uniform(keys[3], (D,), jnp.float32, -bound, bound),
        "wv": jax.random.uniform(keys[4], (D, D), jnp.float32, -bound, bound),
        "bv": jax.random.uniform(keys[5], (D,), jnp.float32, -bound, bound),
        "wo": jax.random.uniform(keys[6], (D, D), jnp.float32, -bound, bound),
        "bo": jax.random.uniform(keys[7], (D,), jnp.float32, -bound, bound),
    }

    query = jax.random.normal(keys[8], (B, S, D), jnp.float32)
    key_t = jax.random.normal(keys[9], (B, S, D), jnp.float32)
    value = jax.random.normal(keys[10], (B, S, D), jnp.float32)

    ref = reference_mha(query, key_t, value, params, h=H)

    # Precision mode: f32 operands, exact softmax normalization.
    out_f32 = multi_headed_attention(query, key_t, value, params, h=H,
                                     compute_dtype=jnp.float32)
    out_f32 = jax.block_until_ready(out_f32)
    assert out_f32.shape == (B, S, D)
    assert jnp.allclose(out_f32, ref, atol=2e-3, rtol=2e-3), "f32 mismatch vs reference"

    # Perf mode: bf16 operands with f32 accumulation (looser tolerance).
    out_bf16 = multi_headed_attention(query, key_t, value, params, h=H,
                                      compute_dtype=jnp.bfloat16)
    out_bf16 = jax.block_until_ready(out_bf16)
    assert out_bf16.shape == (B, S, D)
    assert jnp.allclose(out_bf16, ref, atol=3e-2, rtol=5e-2), "bf16 mismatch vs reference"

    # Exercise the Q-tile grid axis + multi-chunk online softmax + KV-scratch
    # reuse (S=16 split into two 8-row Q tiles and two 8-row KV chunks).
    S2 = 16
    q2 = jax.random.normal(keys[11], (B, S2, D), jnp.float32)
    k2 = jax.random.normal(keys[12], (B, S2, D), jnp.float32)
    v2 = jax.random.normal(keys[13], (B, S2, D), jnp.float32)
    ref2 = reference_mha(q2, k2, v2, params, h=H)
    out2 = multi_headed_attention(q2, k2, v2, params, h=H,
                                  compute_dtype=jnp.float32,
                                  q_tile=8, kv_chunk=8)
    out2 = jax.block_until_ready(out2)
    assert out2.shape == (B, S2, D)
    assert jnp.allclose(out2, ref2, atol=2e-3, rtol=2e-3), "tiled mismatch vs reference"

    print("KERNEL_OK")
</pallas_src>

<mosaic_0001>
module attributes {stable_mosaic.version = 11 : i64} {
  func.func @mha_kernel(%arg0: i32, %arg1: i32, %arg2: memref<1x8x32xf32, #tpu.memory_space<vmem>>, %arg3: memref<1x8x32xf32, #tpu.memory_space<vmem>>, %arg4: memref<1x8x32xf32, #tpu.memory_space<vmem>>, %arg5: memref<32x32xf32, #tpu.memory_space<vmem>>, %arg6: memref<1x32xf32, #tpu.memory_space<vmem>>, %arg7: memref<32x32xf32, #tpu.memory_space<vmem>>, %arg8: memref<1x32xf32, #tpu.memory_space<vmem>>, %arg9: memref<32x32xf32, #tpu.memory_space<vmem>>, %arg10: memref<1x32xf32, #tpu.memory_space<vmem>>, %arg11: memref<32x32xf32, #tpu.memory_space<vmem>>, %arg12: memref<1x32xf32, #tpu.memory_space<vmem>>, %arg13: memref<1x8x32xf32, #tpu.memory_space<vmem>>, %arg14: memref<4x8x8xf32, #tpu.memory_space<vmem>>, %arg15: memref<4x8x8xf32, #tpu.memory_space<vmem>>, %arg16: memref<4x8x8xf32, #tpu.memory_space<vmem>>, %arg17: memref<8x32xf32, #tpu.memory_space<vmem>>) attributes {dimension_semantics = [#tpu.dimension_semantics<parallel>, #tpu.dimension_semantics<arbitrary>], iteration_bounds = array<i64: 2, 1>, scalar_prefetch = 0 : i64, scratch_operands = 4 : i64, tpu.core_type = #tpu.core_type<tc>, window_params = [{transform_indices = @transform_0, window_bounds = array<i64: 1, 8, 32>}, {transform_indices = @transform_1, window_bounds = array<i64: 1, 8, 32>}, {transform_indices = @transform_2, window_bounds = array<i64: 1, 8, 32>}, {pipeline_mode = #tpu.pipeline_mode<synchronous>, transform_indices = @transform_3, window_bounds = array<i64: 32, 32>}, {pipeline_mode = #tpu.pipeline_mode<synchronous>, transform_indices = @transform_4, window_bounds = array<i64: 1, 32>}, {pipeline_mode = #tpu.pipeline_mode<synchronous>, transform_indices = @transform_5, window_bounds = array<i64: 32, 32>}, {pipeline_mode = #tpu.pipeline_mode<synchronous>, transform_indices = @transform_6, window_bounds = array<i64: 1, 32>}, {pipeline_mode = #tpu.pipeline_mode<synchronous>, transform_indices = @transform_7, window_bounds = array<i64: 32, 32>}, {pipeline_mode = #tpu.pipeline_mode<synchronous>, transform_indices = @transform_8, window_bounds = array<i64: 1, 32>}, {pipeline_mode = #tpu.pipeline_mode<synchronous>, transform_indices = @transform_9, window_bounds = array<i64: 32, 32>}, {pipeline_mode = #tpu.pipeline_mode<synchronous>, transform_indices = @transform_10, window_bounds = array<i64: 1, 32>}, {transform_indices = @transform_11, window_bounds = array<i64: 1, 8, 32>}]} {
    %c0_i32 = arith.constant 0 : i32
    %0 = arith.cmpi eq, %arg1, %c0_i32 : i32
    %1 = arith.extui %0 : i1 to i32
    %c0_i32_0 = arith.constant 0 : i32
    %2 = arith.cmpi ne, %1, %c0_i32_0 : i32
    scf.if %2 {
      %c0_46 = arith.constant 0 : index
      %c0_47 = arith.constant 0 : index
      %c0_48 = arith.constant 0 : index
      %75 = vector.load %arg3[%c0_46, %c0_47, %c0_48] : memref<1x8x32xf32, #tpu.memory_space<vmem>>, vector<1x8x32xf32>
      %76 = vector.shape_cast %75 : vector<1x8x32xf32> to vector<8x32xf32>
      %c0_49 = arith.constant 0 : index
      %c0_50 = arith.constant 0 : index
      %c0_51 = arith.constant 0 : index
      %77 = vector.load %arg4[%c0_49, %c0_50, %c0_51] : memref<1x8x32xf32, #tpu.memory_space<vmem>>, vector<1x8x32xf32>
      %78 = vector.shape_cast %77 : vector<1x8x32xf32> to vector<8x32xf32>
      %c0_52 = arith.constant 0 : index
      %c0_53 = arith.constant 0 : index
      %79 = vector.load %arg7[%c0_52, %c0_53] : memref<32x32xf32, #tpu.memory_space<vmem>>, vector<32x32xf32>
      %cst_54 = arith.constant dense<0.000000e+00> : vector<8x32xf32>
      %80 = tpu.matmul %76, %79, %cst_54 {dimension_numbers = #tpu.dot_dimension_numbers<[1], [0], [0], [1], [0, 0, 1, 1], [], []>} : vector<8x32xf32>, vector<32x32xf32>, vector<8x32xf32> -> vector<8x32xf32>
      %c0_55 = arith.constant 0 : index
      %c0_56 = arith.constant 0 : index
      %81 = vector.load %arg8[%c0_55, %c0_56] : memref<1x32xf32, #tpu.memory_space<vmem>>, vector<1x32xf32>
      %82 = vector.broadcast %81 : vector<1x32xf32> to vector<8x32xf32>
      %83 = arith.addf %80, %82 : vector<8x32xf32>
      %84 = vector.extract_strided_slice %83 {offsets = [0, 0], sizes = [8, 8], strides = [1, 1]} : vector<8x32xf32> to vector<8x8xf32>
      %c0_57 = arith.constant 0 : index
      %c0_58 = arith.constant 0 : index
      %c0_59 = arith.constant 0 : index
      %85 = vector.load %arg14[%c0_57, %c0_58, %c0_59] : memref<4x8x8xf32, #tpu.memory_space<vmem>>, vector<1x8x8xf32>
      %86 = vector.shape_cast %85 : vector<1x8x8xf32> to vector<8x8xf32>
      %87 = vector.shape_cast %84 : vector<8x8xf32> to vector<1x8x8xf32>
      tpu.vector_store %arg14[%c0_57, %c0_58, %c0_59], %87 {strides = array<i32>} : memref<4x8x8xf32, #tpu.memory_space<vmem>>, vector<1x8x8xf32>,
      %88 = vector.extract_strided_slice %83 {offsets = [0, 8], sizes = [8, 8], strides = [1, 1]} : vector<8x32xf32> to vector<8x8xf32>
      %c1_60 = arith.constant 1 : index
      %c0_61 = arith.constant 0 : index
      %c0_62 = arith.constant 0 : index
      %89 = vector.load %arg14[%c1_60, %c0_61, %c0_62] : memref<4x8x8xf32, #tpu.memory_space<vmem>>, vector<1x8x8xf32>
      %90 = vector.shape_cast %89 : vector<1x8x8xf32> to vector<8x8xf32>
      %91 = vector.shape_cast %88 : vector<8x8xf32> to vector<1x8x8xf32>
      tpu.vector_store %arg14[%c1_60, %c0_61, %c0_62], %91 {strides = array<i32>} : memref<4x8x8xf32, #tpu.memory_space<vmem>>, vector<1x8x8xf32>,
      %92 = vector.extract_strided_slice %83 {offsets = [0, 16], sizes = [8, 8], strides = [1, 1]} : vector<8x32xf32> to vector<8x8xf32>
      %c2_63 = arith.constant 2 : index
      %c0_64 = arith.constant 0 : index
      %c0_65 = arith.constant 0 : index
      %93 = vector.load %arg14[%c2_63, %c0_64, %c0_65] : memref<4x8x8xf32, #tpu.memory_space<vmem>>, vector<1x8x8xf32>
      %94 = vector.shape_cast %93 : vector<1x8x8xf32> to vector<8x8xf32>
      %95 = vector.shape_cast %92 : vector<8x8xf32> to vector<1x8x8xf32>
      tpu.vector_store %arg14[%c2_63, %c0_64, %c0_65], %95 {strides = array<i32>} : memref<4x8x8xf32, #tpu.memory_space<vmem>>, vector<1x8x8xf32>,
      %96 = vector.extract_strided_slice %83 {offsets = [0, 24], sizes = [8, 8], strides = [1, 1]} : vector<8x32xf32> to vector<8x8xf32>
      %c3_66 = arith.constant 3 : index
      %c0_67 = arith.constant 0 : index
      %c0_68 = arith.constant 0 : index
      %97 = vector.load %arg14[%c3_66, %c0_67, %c0_68] : memref<4x8x8xf32, #tpu.memory_space<vmem>>, vector<1x8x8xf32>
      %98 = vector.shape_cast %97 : vector<1x8x8xf32> to vector<8x8xf32>
      %99 = vector.shape_cast %96 : vector<8x8xf32> to vector<1x8x8xf32>
      tpu.vector_store %arg14[%c3_66, %c0_67, %c0_68], %99 {strides = array<i32>} : memref<4x8x8xf32, #tpu.memory_space<vmem>>, vector<1x8x8xf32>,
      %c0_69 = arith.constant 0 : index
      %c0_70 = arith.constant 0 : index
      %100 = vector.load %arg9[%c0_69, %c0_70] : memref<32x32xf32, #tpu.memory_space<vmem>>, vector<32x32xf32>
      %cst_71 = arith.constant dense<0.000000e+00> : vector<8x32xf32>
      %101 = tpu.matmul %78, %100, %cst_71 {dimension_numbers = #tpu.dot_dimension_numbers<[1], [0], [0], [1], [0, 0, 1, 1], [], []>} : vector<8x32xf32>, vector<32x32xf32>, vector<8x32xf32> -> vector<8x32xf32>
      %c0_72 = arith.constant 0 : index
      %c0_73 = arith.constant 0 : index
      %102 = vector.load %arg10[%c0_72, %c0_73] : memref<1x32xf32, #tpu.memory_space<vmem>>, vector<1x32xf32>
      %103 = vector.broadcast %102 : vector<1x32xf32> to vector<8x32xf32>
      %104 = arith.addf %101, %103 : vector<8x32xf32>
      %105 = vector.extract_strided_slice %104 {offsets = [0, 0], sizes = [8, 8], strides = [1, 1]} : vector<8x32xf32> to vector<8x8xf32>
      %c0_74 = arith.constant 0 : index
      %c0_75 = arith.constant 0 : index
      %c0_76 = arith.constant 0 : index
      %106 = vector.load %arg15[%c0_74, %c0_75, %c0_76] : memref<4x8x8xf32, #tpu.memory_space<vmem>>, vector<1x8x8xf32>
      %107 = vector.shape_cast %106 : vector<1x8x8xf32> to vector<8x8xf32>
      %108 = vector.shape_cast %105 : vector<8x8xf32> to vector<1x8x8xf32>
      tpu.vector_store %arg15[%c0_74, %c0_75, %c0_76], %108 {strides = array<i32>} : memref<4x8x8xf32, #tpu.memory_space<vmem>>, vector<1x8x8xf32>,
      %109 = vector.extract_strided_slice %104 {offsets = [0, 8], sizes = [8, 8], strides = [1, 1]} : vector<8x32xf32> to vector<8x8xf32>
      %c1_77 = arith.constant 1 : index
      %c0_78 = arith.constant 0 : index
      %c0_79 = arith.constant 0 : index
      %110 = vector.load %arg15[%c1_77, %c0_78, %c0_79] : memref<4x8x8xf32, #tpu.memory_space<vmem>>, vector<1x8x8xf32>
      %111 = vector.shape_cast %110 : vector<1x8x8xf32> to vector<8x8xf32>
      %112 = vector.shape_cast %109 : vector<8x8xf32> to vector<1x8x8xf32>
      tpu.vector_store %arg15[%c1_77, %c0_78, %c0_79], %112 {strides = array<i32>} : memref<4x8x8xf32, #tpu.memory_space<vmem>>, vector<1x8x8xf32>,
      %113 = vector.extract_strided_slice %104 {offsets = [0, 16], sizes = [8, 8], strides = [1, 1]} : vector<8x32xf32> to vector<8x8xf32>
      %c2_80 = arith.constant 2 : index
      %c0_81 = arith.constant 0 : index
      %c0_82 = arith.constant 0 : index
      %114 = vector.load %arg15[%c2_80, %c0_81, %c0_82] : memref<4x8x8xf32, #tpu.memory_space<vmem>>, vector<1x8x8xf32>
      %115 = vector.shape_cast %114 : vector<1x8x8xf32> to vector<8x8xf32>
      %116 = vector.shape_cast %113 : vector<8x8xf32> to vector<1x8x8xf32>
      tpu.vector_store %arg15[%c2_80, %c0_81, %c0_82], %116 {strides = array<i32>} : memref<4x8x8xf32, #tpu.memory_space<vmem>>, vector<1x8x8xf32>,
      %117 = vector.extract_strided_slice %104 {offsets = [0, 24], sizes = [8, 8], strides = [1, 1]} : vector<8x32xf32> to vector<8x8xf32>
      %c3_83 = arith.constant 3 : index
      %c0_84 = arith.constant 0 : index
      %c0_85 = arith.constant 0 : index
      %118 = vector.load %arg15[%c3_83, %c0_84, %c0_85] : memref<4x8x8xf32, #tpu.memory_space<vmem>>, vector<1x8x8xf32>
      %119 = vector.shape_cast %118 : vector<1x8x8xf32> to vector<8x8xf32>
      %120 = vector.shape_cast %117 : vector<8x8xf32> to vector<1x8x8xf32>
      tpu.vector_store %arg15[%c3_83, %c0_84, %c0_85], %120 {strides = array<i32>} : memref<4x8x8xf32, #tpu.memory_space<vmem>>, vector<1x8x8xf32>,
    } else {
    }
    %c0 = arith.constant 0 : index
    %c0_1 = arith.constant 0 : index
    %c0_2 = arith.constant 0 : index
    %3 = vector.load %arg2[%c0, %c0_1, %c0_2] : memref<1x8x32xf32, #tpu.memory_space<vmem>>, vector<1x8x32xf32>
    %4 = vector.shape_cast %3 : vector<1x8x32xf32> to vector<8x32xf32>
    %c0_3 = arith.constant 0 : index
    %c0_4 = arith.constant 0 : index
    %5 = vector.load %arg5[%c0_3, %c0_4] : memref<32x32xf32, #tpu.memory_space<vmem>>, vector<32x32xf32>
    %cst = arith.constant dense<0.000000e+00> : vector<8x32xf32>
    %6 = tpu.matmul %4, %5, %cst {dimension_numbers = #tpu.dot_dimension_numbers<[1], [0], [0], [1], [0, 0, 1, 1], [], []>} : vector<8x32xf32>, vector<32x32xf32>, vector<8x32xf32> -> vector<8x32xf32>
    %c0_5 = arith.constant 0 : index
    %c0_6 = arith.constant 0 : index
    %7 = vector.load %arg6[%c0_5, %c0_6] : memref<1x32xf32, #tpu.memory_space<vmem>>, vector<1x32xf32>
    %8 = vector.broadcast %7 : vector<1x32xf32> to vector<8x32xf32>
    %9 = arith.addf %6, %8 : vector<8x32xf32>
    %10 = vector.extract_strided_slice %9 {offsets = [0, 0], sizes = [8, 8], strides = [1, 1]} : vector<8x32xf32> to vector<8x8xf32>
    %c0_7 = arith.constant 0 : index
    %c0_8 = arith.constant 0 : index
    %c0_9 = arith.constant 0 : index
    %11 = vector.load %arg16[%c0_7, %c0_8, %c0_9] : memref<4x8x8xf32, #tpu.memory_space<vmem>>, vector<1x8x8xf32>
    %12 = vector.shape_cast %11 : vector<1x8x8xf32> to vector<8x8xf32>
    %13 = vector.shape_cast %10 : vector<8x8xf32> to vector<1x8x8xf32>
    tpu.vector_store %arg16[%c0_7, %c0_8, %c0_9], %13 {strides = array<i32>} : memref<4x8x8xf32, #tpu.memory_space<vmem>>, vector<1x8x8xf32>,
    %14 = vector.extract_strided_slice %9 {offsets = [0, 8], sizes = [8, 8], strides = [1, 1]} : vector<8x32xf32> to vector<8x8xf32>
    %c1 = arith.constant 1 : index
    %c0_10 = arith.constant 0 : index
    %c0_11 = arith.constant 0 : index
    %15 = vector.load %arg16[%c1, %c0_10, %c0_11] : memref<4x8x8xf32, #tpu.memory_space<vmem>>, vector<1x8x8xf32>
    %16 = vector.shape_cast %15 : vector<1x8x8xf32> to vector<8x8xf32>
    %17 = vector.shape_cast %14 : vector<8x8xf32> to vector<1x8x8xf32>
    tpu.vector_store %arg16[%c1, %c0_10, %c0_11], %17 {strides = array<i32>} : memref<4x8x8xf32, #tpu.memory_space<vmem>>, vector<1x8x8xf32>,
    %18 = vector.extract_strided_slice %9 {offsets = [0, 16], sizes = [8, 8], strides = [1, 1]} : vector<8x32xf32> to vector<8x8xf32>
    %c2 = arith.constant 2 : index
    %c0_12 = arith.constant 0 : index
    %c0_13 = arith.constant 0 : index
    %19 = vector.load %arg16[%c2, %c0_12, %c0_13] : memref<4x8x8xf32, #tpu.memory_space<vmem>>, vector<1x8x8xf32>
    %20 = vector.shape_cast %19 : vector<1x8x8xf32> to vector<8x8xf32>
    %21 = vector.shape_cast %18 : vector<8x8xf32> to vector<1x8x8xf32>
    tpu.vector_store %arg16[%c2, %c0_12, %c0_13], %21 {strides = array<i32>} : memref<4x8x8xf32, #tpu.memory_space<vmem>>, vector<1x8x8xf32>,
    %22 = vector.extract_strided_slice %9 {offsets = [0, 24], sizes = [8, 8], strides = [1, 1]} : vector<8x32xf32> to vector<8x8xf32>
    %c3 = arith.constant 3 : index
    %c0_14 = arith.constant 0 : index
    %c0_15 = arith.constant 0 : index
    %23 = vector.load %arg16[%c3, %c0_14, %c0_15] : memref<4x8x8xf32, #tpu.memory_space<vmem>>, vector<1x8x8xf32>
    %24 = vector.shape_cast %23 : vector<1x8x8xf32> to vector<8x8xf32>
    %25 = vector.shape_cast %22 : vector<8x8xf32> to vector<1x8x8xf32>
    tpu.vector_store %arg16[%c3, %c0_14, %c0_15], %25 {strides = array<i32>} : memref<4x8x8xf32, #tpu.memory_space<vmem>>, vector<1x8x8xf32>,
    %c0_16 = arith.constant 0 : index
    %c0_17 = arith.constant 0 : index
    %c0_18 = arith.constant 0 : index
    %26 = vector.load %arg16[%c0_16, %c0_17, %c0_18] : memref<4x8x8xf32, #tpu.memory_space<vmem>>, vector<4x8x8xf32>
    %cst_19 = arith.constant 0xFF800000 : f32
    %27 = vector.broadcast %cst_19 : f32 to vector<4x8x1xf32>
    %cst_20 = arith.constant 0.000000e+00 : f32
    %28 = vector.broadcast %cst_20 : f32 to vector<4x8x1xf32>
    %cst_21 = arith.constant 0.000000e+00 : f32
    %29 = vector.broadcast %cst_21 : f32 to vector<4x8x8xf32>
    %c0_i32_22 = arith.constant 0 : i32
    %c8_i32 = arith.constant 8 : i32
    %30 = arith.muli %c0_i32_22, %c8_i32 : i32
    %31 = tpu.assume_multiple %30, 8 : i32
    %c0_23 = arith.constant 0 : index
    %32 = arith.index_cast %31 : i32 to index
    %c0_24 = arith.constant 0 : index
    %33 = vector.load %arg14[%c0_23, %32, %c0_24] : memref<4x8x8xf32, #tpu.memory_space<vmem>>, vector<4x8x8xf32>
    %c0_25 = arith.constant 0 : index
    %34 = arith.index_cast %31 : i32 to index
    %c0_26 = arith.constant 0 : index
    %35 = vector.load %arg15[%c0_25, %34, %c0_26] : memref<4x8x8xf32, #tpu.memory_space<vmem>>, vector<4x8x8xf32>
    "tpu.trace_start"() <{level = 10 : i32, message = "bqd,bkd->bqk"}> : () -> ()
    %cst_27 = arith.constant dense<0.000000e+00> : vector<4x8x8xf32>
    %36 = tpu.matmul %26, %33, %cst_27 {dimension_numbers = #tpu.dot_dimension_numbers<[2], [2], [1], [1], [0, 0, 0, 1, 1, 1], [0], [0]>} : vector<4x8x8xf32>, vector<4x8x8xf32>, vector<4x8x8xf32> -> vector<4x8x8xf32>
    "tpu.trace_stop"() : () -> ()
    %cst_28 = arith.constant dense<0xFF800000> : vector<4x8xf32>
    %37 = vector.multi_reduction <maximumf>, %36, %cst_28 [2] : vector<4x8x8xf32> to vector<4x8xf32>
    %38 = vector.shape_cast %37 : vector<4x8xf32> to vector<4x8x1xf32>
    %39 = arith.maximumf %27, %38 : vector<4x8x1xf32>
    %40 = arith.subf %27, %39 : vector<4x8x1xf32>
    %41 = math.exp %40 : vector<4x8x1xf32>
    %42 = vector.broadcast %39 : vector<4x8x1xf32> to vector<4x8x8xf32>
    %43 = arith.subf %36, %42 : vector<4x8x8xf32>
    %44 = math.exp %43 : vector<4x8x8xf32>
    %45 = arith.mulf %41, %28 : vector<4x8x1xf32>
    %cst_29 = arith.constant dense<0.000000e+00> : vector<4x8xf32>
    %46 = vector.multi_reduction <add>, %44, %cst_29 [2] : vector<4x8x8xf32> to vector<4x8xf32>
    %47 = vector.shape_cast %46 : vector<4x8xf32> to vector<4x8x1xf32>
    %48 = arith.addf %45, %47 : vector<4x8x1xf32>
    "tpu.trace_start"() <{level = 10 : i32, message = "bqk,bkd->bqd"}> : () -> ()
    %cst_30 = arith.constant dense<0.000000e+00> : vector<4x8x8xf32>
    %49 = tpu.matmul %44, %35, %cst_30 {dimension_numbers = #tpu.dot_dimension_numbers<[2], [1], [1], [2], [0, 0, 0, 1, 1, 2], [0], [0]>} : vector<4x8x8xf32>, vector<4x8x8xf32>, vector<4x8x8xf32> -> vector<4x8x8xf32>
    "tpu.trace_stop"() : () -> ()
    %50 = vector.broadcast %41 : vector<4x8x1xf32> to vector<4x8x8xf32>
    %51 = arith.mulf %50, %29 : vector<4x8x8xf32>
    %52 = arith.addf %51, %49 : vector<4x8x8xf32>
    %c1_i32 = arith.constant 1 : i32
    %53 = vector.broadcast %48 : vector<4x8x1xf32> to vector<4x8x8xf32>
    %54 = arith.divf %52, %53 : vector<4x8x8xf32>
    %55 = vector.extract_strided_slice %54 {offsets = [0, 0, 0], sizes = [1, 8, 8], strides = [1, 1, 1]} : vector<4x8x8xf32> to vector<1x8x8xf32>
    %56 = vector.shape_cast %55 : vector<1x8x8xf32> to vector<8x8xf32>
    %c0_31 = arith.constant 0 : index
    %c0_32 = arith.constant 0 : index
    %57 = vector.load %arg17[%c0_31, %c0_32] : memref<8x32xf32, #tpu.memory_space<vmem>>, vector<8x8xf32>
    tpu.vector_store %arg17[%c0_31, %c0_32], %56 {strides = array<i32>} : memref<8x32xf32, #tpu.memory_space<vmem>>, vector<8x8xf32>,
    %58 = vector.extract_strided_slice %54 {offsets = [1, 0, 0], sizes = [1, 8, 8], strides = [1, 1, 1]} : vector<4x8x8xf32> to vector<1x8x8xf32>
    %59 = vector.shape_cast %58 : vector<1x8x8xf32> to vector<8x8xf32>
    %c0_33 = arith.constant 0 : index
    %c8 = arith.constant 8 : index
    %60 = vector.load %arg17[%c0_33, %c8] : memref<8x32xf32, #tpu.memory_space<vmem>>, vector<8x8xf32>
    tpu.vector_store %arg17[%c0_33, %c8], %59 {strides = array<i32>} : memref<8x32xf32, #tpu.memory_space<vmem>>, vector<8x8xf32>,
    %61 = vector.extract_strided_slice %54 {offsets = [2, 0, 0], sizes = [1, 8, 8], strides = [1, 1, 1]} : vector<4x8x8xf32> to vector<1x8x8xf32>
    %62 = vector.shape_cast %61 : vector<1x8x8xf32> to vector<8x8xf32>
    %c0_34 = arith.constant 0 : index
    %c16 = arith.constant 16 : index
    %63 = vector.load %arg17[%c0_34, %c16] : memref<8x32xf32, #tpu.memory_space<vmem>>, vector<8x8xf32>
    tpu.vector_store %arg17[%c0_34, %c16], %62 {strides = array<i32>} : memref<8x32xf32, #tpu.memory_space<vmem>>, vector<8x8xf32>,
    %64 = vector.extract_strided_slice %54 {offsets = [3, 0, 0], sizes = [1, 8, 8], strides = [1, 1, 1]} : vector<4x8x8xf32> to vector<1x8x8xf32>
    %65 = vector.shape_cast %64 : vector<1x8x8xf32> to vector<8x8xf32>
    %c0_35 = arith.constant 0 : index
    %c24 = arith.constant 24 : index
    %66 = vector.load %arg17[%c0_35, %c24] : memref<8x32xf32, #tpu.memory_space<vmem>>, vector<8x8xf32>
    tpu.vector_store %arg17[%c0_35, %c24], %65 {strides = array<i32>} : memref<8x32xf32, #tpu.memory_space<vmem>>, vector<8x8xf32>,
    %c0_36 = arith.constant 0 : index
    %c0_37 = arith.constant 0 : index
    %67 = vector.load %arg17[%c0_36, %c0_37] : memref<8x32xf32, #tpu.memory_space<vmem>>, vector<8x32xf32>
    %c0_38 = arith.constant 0 : index
    %c0_39 = arith.constant 0 : index
    %68 = vector.load %arg11[%c0_38, %c0_39] : memref<32x32xf32, #tpu.memory_space<vmem>>, vector<32x32xf32>
    %cst_40 = arith.constant dense<0.000000e+00> : vector<8x32xf32>
    %69 = tpu.matmul %67, %68, %cst_40 {dimension_numbers = #tpu.dot_dimension_numbers<[1], [0], [0], [1], [0, 0, 1, 1], [], []>} : vector<8x32xf32>, vector<32x32xf32>, vector<8x32xf32> -> vector<8x32xf32>
    %c0_41 = arith.constant 0 : index
    %c0_42 = arith.constant 0 : index
    %70 = vector.load %arg12[%c0_41, %c0_42] : memref<1x32xf32, #tpu.memory_space<vmem>>, vector<1x32xf32>
    %71 = vector.broadcast %70 : vector<1x32xf32> to vector<8x32xf32>
    %72 = arith.addf %69, %71 : vector<8x32xf32>
    %73 = vector.shape_cast %72 : vector<8x32xf32> to vector<1x8x32xf32>
    %c0_43 = arith.constant 0 : index
    %c0_44 = arith.constant 0 : index
    %c0_45 = arith.constant 0 : index
    %74 = vector.load %arg13[%c0_43, %c0_44, %c0_45] : memref<1x8x32xf32, #tpu.memory_space<vmem>>, vector<1x8x32xf32>
    tpu.vector_store %arg13[%c0_43, %c0_44, %c0_45], %73 {strides = array<i32>} : memref<1x8x32xf32, #tpu.memory_space<vmem>>, vector<1x8x32xf32>,
    return
  }
  func.func @transform_0(%arg0: i32, %arg1: i32) -> (i32, i32, i32) {
    %c0_i32 = arith.constant 0 : i32
    %c0_i32_0 = arith.constant 0 : i32
    return %arg0, %arg1, %c0_i32 : i32, i32, i32
  }
  func.func @transform_1(%arg0: i32, %arg1: i32) -> (i32, i32, i32) {
    %c0_i32 = arith.constant 0 : i32
    %c0_i32_0 = arith.constant 0 : i32
    %c0_i32_1 = arith.constant 0 : i32
    return %arg0, %c0_i32, %c0_i32_0 : i32, i32, i32
  }
  func.func @transform_2(%arg0: i32, %arg1: i32) -> (i32, i32, i32) {
    %c0_i32 = arith.constant 0 : i32
    %c0_i32_0 = arith.constant 0 : i32
    %c0_i32_1 = arith.constant 0 : i32
    return %arg0, %c0_i32, %c0_i32_0 : i32, i32, i32
  }
  func.func @transform_3(%arg0: i32, %arg1: i32) -> (i32, i32) {
    %c0_i32 = arith.constant 0 : i32
    %c0_i32_0 = arith.constant 0 : i32
    %c0_i32_1 = arith.constant 0 : i32
    return %c0_i32, %c0_i32_0 : i32, i32
  }
  func.func @transform_4(%arg0: i32, %arg1: i32) -> (i32, i32) {
    %c0_i32 = arith.constant 0 : i32
    %c0_i32_0 = arith.constant 0 : i32
    %c0_i32_1 = arith.constant 0 : i32
    return %c0_i32, %c0_i32_0 : i32, i32
  }
  func.func @transform_5(%arg0: i32, %arg1: i32) -> (i32, i32) {
    %c0_i32 = arith.constant 0 : i32
    %c0_i32_0 = arith.constant 0 : i32
    %c0_i32_1 = arith.constant 0 : i32
    return %c0_i32, %c0_i32_0 : i32, i32
  }
  func.func @transform_6(%arg0: i32, %arg1: i32) -> (i32, i32) {
    %c0_i32 = arith.constant 0 : i32
    %c0_i32_0 = arith.constant 0 : i32
    %c0_i32_1 = arith.constant 0 : i32
    return %c0_i32, %c0_i32_0 : i32, i32
  }
  func.func @transform_7(%arg0: i32, %arg1: i32) -> (i32, i32) {
    %c0_i32 = arith.constant 0 : i32
    %c0_i32_0 = arith.constant 0 : i32
    %c0_i32_1 = arith.constant 0 : i32
    return %c0_i32, %c0_i32_0 : i32, i32
  }
  func.func @transform_8(%arg0: i32, %arg1: i32) -> (i32, i32) {
    %c0_i32 = arith.constant 0 : i32
    %c0_i32_0 = arith.constant 0 : i32
    %c0_i32_1 = arith.constant 0 : i32
    return %c0_i32, %c0_i32_0 : i32, i32
  }
  func.func @transform_9(%arg0: i32, %arg1: i32) -> (i32, i32) {
    %c0_i32 = arith.constant 0 : i32
    %c0_i32_0 = arith.constant 0 : i32
    %c0_i32_1 = arith.constant 0 : i32
    return %c0_i32, %c0_i32_0 : i32, i32
  }
  func.func @transform_10(%arg0: i32, %arg1: i32) -> (i32, i32) {
    %c0_i32 = arith.constant 0 : i32
    %c0_i32_0 = arith.constant 0 : i32
    %c0_i32_1 = arith.constant 0 : i32
    return %c0_i32, %c0_i32_0 : i32, i32
  }
  func.func @transform_11(%arg0: i32, %arg1: i32) -> (i32, i32, i32) {
    %c0_i32 = arith.constant 0 : i32
    %c0_i32_0 = arith.constant 0 : i32
    return %arg0, %arg1, %c0_i32 : i32, i32, i32
  }
}

</mosaic_0001>

<llo_original>
// kernel: tpu_custom_call.1
$region0: #{tpu_custom_call.1}
  #allocation0 [shape = 'u32[]', space=smem, size = 0x4, offset = 0x4, fixed_abs, tag = 'smem constant byte address 0x4 - core index']
  #allocation1 [shape = 'u32[144,128]{1,0:T(1,128)}', space=vmem, size = 0x12000, scoped, tag = 'internal scratch']
  #allocation2 [shape = 'f32[4,8,8]{2,1,0:T(8,128)}', space=vmem, size = 0x4000, scoped, tag = 'scratch operand']
  #allocation3 [shape = 'f32[4,8,8]{2,1,0:T(8,128)}', space=vmem, size = 0x4000, scoped, tag = 'scratch operand']
  #allocation4 [shape = 'f32[4,8,8]{2,1,0:T(8,128)}', space=vmem, size = 0x4000, scoped, tag = 'scratch operand']
  #allocation5 [shape = 'f32[8,32]{1,0:T(8,128)}', space=vmem, size = 0x1000, scoped, tag = 'scratch operand']
  %s0 = inlined_call_operand.hbm [shape: f32[2,8,32], index: 0, kind: input, shape index: {}]
  %s1 = inlined_call_operand.hbm [shape: f32[2,8,32], index: 1, kind: input, shape index: {}]
  %s2 = inlined_call_operand.hbm [shape: f32[2,8,32], index: 2, kind: input, shape index: {}]
  %s3 = inlined_call_operand.hbm [shape: f32[32,32], index: 3, kind: input, shape index: {}]
  %s4 = inlined_call_operand.vmem [shape: f32[1,32], index: 4, kind: input, shape index: {}]
  %s5 = inlined_call_operand.hbm [shape: f32[32,32], index: 5, kind: input, shape index: {}]
  %s6 = inlined_call_operand.vmem [shape: f32[1,32], index: 6, kind: input, shape index: {}]
  %s7 = inlined_call_operand.hbm [shape: f32[32,32], index: 7, kind: input, shape index: {}]
  %s8 = inlined_call_operand.hbm [shape: f32[1,32], index: 8, kind: input, shape index: {}]
  %s9 = inlined_call_operand.vmem [shape: f32[32,32], index: 9, kind: input, shape index: {}]
  %s10 = inlined_call_operand.vmem [shape: f32[1,32], index: 10, kind: input, shape index: {}]
  %s11 = inlined_call_operand.hbm [shape: f32[2,8,32], index: 11, kind: output, shape index: {}]
  %s12 = sld [smem:[#allocation0]]
  $region109: #{tpu_custom_call.1} parent=0
    _
  %s14 = ssub.s32 1, %s12
  %s15 = scalar_select 0, %s14, %s12
  $region1: #{tpu_custom_call.1} parent=0
    #allocation6 [shape = 'u8[8192]{0}', space=vmem, size = 0x2000, scoped, tag = 'input window, operand 0']
    #allocation7 [shape = 's32[2]{0}', space=sflag, size = 0x8, scoped, tag = 'scoped memory for tpu_custom_call.1']
    #allocation8 [shape = 's32[2]{0}', space=sflag, size = 0x8, scoped, tag = 'scoped memory for tpu_custom_call.1']
    #allocation9 [shape = 'u8[8192]{0}', space=vmem, size = 0x2000, scoped, tag = 'input window, operand 1']
    #allocation10 [shape = 's32[2]{0}', space=sflag, size = 0x8, scoped, tag = 'scoped memory for tpu_custom_call.1']
    #allocation11 [shape = 'u8[8192]{0}', space=vmem, size = 0x2000, scoped, tag = 'input window, operand 2']
    #allocation12 [shape = 'u8[16384]{0}', space=vmem, size = 0x4000, scoped, tag = 'input window, operand 3, single buffered']
    #allocation13 [shape = 's32[1]{0}', space=sflag, size = 0x4, scoped, tag = 'scoped memory for tpu_custom_call.1']
    #allocation14 [shape = 'u8[16384]{0}', space=vmem, size = 0x4000, scoped, tag = 'input window, operand 5, single buffered']
    #allocation15 [shape = 'u8[16384]{0}', space=vmem, size = 0x4000, scoped, tag = 'input window, operand 7, single buffered']
    #allocation16 [shape = 's32[1]{0}', space=sflag, size = 0x4, scoped, tag = 'scoped memory for tpu_custom_call.1']
    #allocation17 [shape = 'u8[512]{0}', space=vmem, size = 0x400, scoped, tag = 'input window, operand 8, single buffered']
    #allocation18 [shape = 'u8[8192]{0}', space=vmem, size = 0x2000, scoped, tag = 'output window, operand 0']
    %16 = vsyncpa [#allocation7], 0
    %s17 = scalar_lea.sflag [#allocation7], 1
    %18 = vsyncpa %s17, 0
    %19 = vsyncpa [#allocation10], 0
    %s20 = scalar_lea.sflag [#allocation10], 1
    %21 = vsyncpa %s20, 0
    %22 = vsyncpa [#allocation13], 0
    %23 = vsyncpa [#allocation16], 0
    %24 = vsyncpa [#allocation8], 0
    %s25 = scalar_lea.sflag [#allocation8], 1
    %26 = vsyncpa %s25, 0
    loop: start=0, step=1, limit=4
    $region2: #{tpu_custom_call.1} parent=1 // loop_pre_header
      _
    $region3: #{tpu_custom_call.1} parent=1 // loop_header
      %s28 = sphi 0, %s32
      %p29 = scmp.ge.s32.totalorder %s28, 4
      %s35 = sphi 0, %s47
      %s36 = sphi 0, %s43
      %s37 = sphi 0, %s35
      %s38 = sphi 0, %s36
      %s39 = sphi 0, %s37
      %s40 = sphi 0, %s38
      %s52 = sphi 0, %s54
      %s55 = sphi 0, %s52
      %s56 = sphi 0, %s55
      %s72 = sphi 0, %s56
      %s78 = sphi 0, %s80
      %s81 = sphi 0, %s78
      %s82 = sphi 0, %s81
      %s98 = sphi 0, %s82
      %s104 = sphi 0, %s106
      %s107 = sphi 0, %s104
      %s108 = sphi 0, %s107
      %s124 = sphi 0, %s108
      %s128 = sphi 0, %s128
      %s130 = sphi 0, %s128
      %s131 = sphi 0, %s130
      %s145 = sphi 0, %s131
      %s149 = sphi 0, %s149
      %s151 = sphi 0, %s149
      %s152 = sphi 0, %s151
      %s166 = sphi 0, %s152
      %s170 = sphi 0, %s170
      %s172 = sphi 0, %s170
      %s173 = sphi 0, %s172
      %s187 = sphi 0, %s173
      %s191 = sphi 0, %s191
      %s193 = sphi 0, %s191
      %s194 = sphi 0, %s193
      %s208 = sphi 0, %s194
      %s212 = sphi 0, %s212
      %s214 = sphi 0, %s212
      %s215 = sphi 0, %s214
      %s229 = sphi 0, %s215
      %s233 = sphi 0, %s233
      %s235 = sphi 0, %s233
      %s236 = sphi 0, %s235
      %s250 = sphi 0, %s236
      %s254 = sphi 0, %s254
      %s256 = sphi 0, %s254
      %s257 = sphi 0, %s256
      %s271 = sphi 0, %s257
      %s275 = sphi 0, %s275
      %s277 = sphi 0, %s275
      %s278 = sphi 0, %s277
      %s292 = sphi 0, %s278
      %s300 = sphi 0, %s302
      %s303 = sphi 0, %s300
      %s304 = sphi 0, %s303
      %s320 = sphi 0, %s304
    $region4: #{tpu_custom_call.1} parent=1 // loop_header_branch
      %31 = sbr.rel (%p29) target = $region8
    $region5: #{tpu_custom_call.1} parent=1 // loop_body
      %s33 = ssub.s32 %s28, 1
      %s34 = ssub.s32 %s28, 2
      %s41 = sadd.s32 1, %s36
      %p42 = scmp.ge.s32.totalorder %s41, 1
      %s43 = scalar_select %p42, 0, %s41
      %s44 = sadd.s32 1, %s35
      %s45 = scalar_select %p42, %s44, %s35
      %p46 = scmp.ge.s32.totalorder %s45, 2
      %s47 = scalar_select %p46, 0, %s45
      %s48 = ssub.s32 %s35, %s47
      %s49 = ssub.s32 %s36, %s43
      %s50 = sor.u32 %s48, %s49
      %p51 = scmp.eq.s32.totalorder %s50, 0
      %s53 = sadd.s32 %s52, 1
      %s54 = scalar_select %p51, %s52, %s53
      %p57 = pneg %p51
      %p58 = scmp.eq.s32.totalorder %s28, 1
      %p59 = por %p57, %p58
      %p60 = scmp.ne.s32.totalorder %s52, %s55
      %p61 = scmp.eq.s32.totalorder %s28, 0
      %p62 = por %p60, %p61
      %p63 = scmp.ne.s32.totalorder %s52, %s55
      %p64 = scmp.eq.s32.totalorder %s33, 1
      %p65 = por %p63, %p64
      %p66 = scmp.ne.s32.totalorder %s55, %s56
      %p67 = scmp.eq.s32.totalorder %s33, 0
      %p68 = por %p66, %p67
      %p69 = scmp.ne.s32.totalorder %s55, %s56
      %p70 = scmp.eq.s32.totalorder %s34, 1
      %p71 = por %p69, %p70
      %p73 = scmp.ne.s32.totalorder %s56, %s72
      %p74 = scmp.eq.s32.totalorder %s34, 0
      %p75 = por %p73, %p74
      %s76 = ssub.s32 %s35, %s47
      %p77 = scmp.eq.s32.totalorder %s76, 0
      %s79 = sadd.s32 %s78, 1
      %s80 = scalar_select %p77, %s78, %s79
      %p83 = pneg %p77
      %p84 = scmp.eq.s32.totalorder %s28, 1
      %p85 = por %p83, %p84
      %p86 = scmp.ne.s32.totalorder %s78, %s81
      %p87 = scmp.eq.s32.totalorder %s28, 0
      %p88 = por %p86, %p87
      %p89 = scmp.ne.s32.totalorder %s78, %s81
      %p90 = scmp.eq.s32.totalorder %s33, 1
      %p91 = por %p89, %p90
      %p92 = scmp.ne.s32.totalorder %s81, %s82
      %p93 = scmp.eq.s32.totalorder %s33, 0
      %p94 = por %p92, %p93
      %p95 = scmp.ne.s32.totalorder %s81, %s82
      %p96 = scmp.eq.s32.totalorder %s34, 1
      %p97 = por %p95, %p96
      %p99 = scmp.ne.s32.totalorder %s82, %s98
      %p100 = scmp.eq.s32.totalorder %s34, 0
      %p101 = por %p99, %p100
      %s102 = ssub.s32 %s35, %s47
      %p103 = scmp.eq.s32.totalorder %s102, 0
      %s105 = sadd.s32 %s104, 1
      %s106 = scalar_select %p103, %s104, %s105
      %p109 = pneg %p103
      %p110 = scmp.eq.s32.totalorder %s28, 1
      %p111 = por %p109, %p110
      %p112 = scmp.ne.s32.totalorder %s104, %s107
      %p113 = scmp.eq.s32.totalorder %s28, 0
      %p114 = por %p112, %p113
      %p115 = scmp.ne.s32.totalorder %s104, %s107
      %p116 = scmp.eq.s32.totalorder %s33, 1
      %p117 = por %p115, %p116
      %p118 = scmp.ne.s32.totalorder %s107, %s108
      %p119 = scmp.eq.s32.totalorder %s33, 0
      %p120 = por %p118, %p119
      %p121 = scmp.ne.s32.totalorder %s107, %s108
      %p122 = scmp.eq.s32.totalorder %s34, 1
      %p123 = por %p121, %p122
      %p125 = scmp.ne.s32.totalorder %s108, %s124
      %p126 = scmp.eq.s32.totalorder %s34, 0
      %p127 = por %p125, %p126
      %s129 = sadd.s32 %s128, 1
      %p132 = scmp.eq.s32.totalorder %s28, 1
      %p133 = scmp.ne.s32.totalorder %s128, %s130
      %p134 = scmp.eq.s32.totalorder %s28, 0
      %p135 = por %p133, %p134
      %p136 = scmp.ne.s32.totalorder %s128, %s130
      %p137 = scmp.eq.s32.totalorder %s33, 1
      %p138 = por %p136, %p137
      %p139 = scmp.ne.s32.totalorder %s130, %s131
      %p140 = scmp.eq.s32.totalorder %s33, 0
      %p141 = por %p139, %p140
      %p142 = scmp.ne.s32.totalorder %s130, %s131
      %p143 = scmp.eq.s32.totalorder %s34, 1
      %p144 = por %p142, %p143
      %p146 = scmp.ne.s32.totalorder %s131, %s145
      %p147 = scmp.eq.s32.totalorder %s34, 0
      %p148 = por %p146, %p147
      %s150 = sadd.s32 %s149, 1
      %p153 = scmp.eq.s32.totalorder %s28, 1
      %p154 = scmp.ne.s32.totalorder %s149, %s151
      %p155 = scmp.eq.s32.totalorder %s28, 0
      %p156 = por %p154, %p155
      %p157 = scmp.ne.s32.totalorder %s149, %s151
      %p158 = scmp.eq.s32.totalorder %s33, 1
      %p159 = por %p157, %p158
      %p160 = scmp.ne.s32.totalorder %s151, %s152
      %p161 = scmp.eq.s32.totalorder %s33, 0
      %p162 = por %p160, %p161
      %p163 = scmp.ne.s32.totalorder %s151, %s152
      %p164 = scmp.eq.s32.totalorder %s34, 1
      %p165 = por %p163, %p164
      %p167 = scmp.ne.s32.totalorder %s152, %s166
      %p168 = scmp.eq.s32.totalorder %s34, 0
      %p169 = por %p167, %p168
      %s171 = sadd.s32 %s170, 1
      %p174 = scmp.eq.s32.totalorder %s28, 1
      %p175 = scmp.ne.s32.totalorder %s170, %s172
      %p176 = scmp.eq.s32.totalorder %s28, 0
      %p177 = por %p175, %p176
      %p178 = scmp.ne.s32.totalorder %s170, %s172
      %p179 = scmp.eq.s32.totalorder %s33, 1
      %p180 = por %p178, %p179
      %p181 = scmp.ne.s32.totalorder %s172, %s173
      %p182 = scmp.eq.s32.totalorder %s33, 0
      %p183 = por %p181, %p182
      %p184 = scmp.ne.s32.totalorder %s172, %s173
      %p185 = scmp.eq.s32.totalorder %s34, 1
      %p186 = por %p184, %p185
      %p188 = scmp.ne.s32.totalorder %s173, %s187
      %p189 = scmp.eq.s32.totalorder %s34, 0
      %p190 = por %p188, %p189
      %s192 = sadd.s32 %s191, 1
      %p195 = scmp.eq.s32.totalorder %s28, 1
      %p196 = scmp.ne.s32.totalorder %s191, %s193
      %p197 = scmp.eq.s32.totalorder %s28, 0
      %p198 = por %p196, %p197
      %p199 = scmp.ne.s32.totalorder %s191, %s193
      %p200 = scmp.eq.s32.totalorder %s33, 1
      %p201 = por %p199, %p200
      %p202 = scmp.ne.s32.totalorder %s193, %s194
      %p203 = scmp.eq.s32.totalorder %s33, 0
      %p204 = por %p202, %p203
      %p205 = scmp.ne.s32.totalorder %s193, %s194
      %p206 = scmp.eq.s32.totalorder %s34, 1
      %p207 = por %p205, %p206
      %p209 = scmp.ne.s32.totalorder %s194, %s208
      %p210 = scmp.eq.s32.totalorder %s34, 0
      %p211 = por %p209, %p210
      %s213 = sadd.s32 %s212, 1
      %p216 = scmp.eq.s32.totalorder %s28, 1
      %p217 = scmp.ne.s32.totalorder %s212, %s214
      %p218 = scmp.eq.s32.totalorder %s28, 0
      %p219 = por %p217, %p218
      %p220 = scmp.ne.s32.totalorder %s212, %s214
      %p221 = scmp.eq.s32.totalorder %s33, 1
      %p222 = por %p220, %p221
      %p223 = scmp.ne.s32.totalorder %s214, %s215
      %p224 = scmp.eq.s32.totalorder %s33, 0
      %p225 = por %p223, %p224
      %p226 = scmp.ne.s32.totalorder %s214, %s215
      %p227 = scmp.eq.s32.totalorder %s34, 1
      %p228 = por %p226, %p227
      %p230 = scmp.ne.s32.totalorder %s215, %s229
      %p231 = scmp.eq.s32.totalorder %s34, 0
      %p232 = por %p230, %p231
      %s234 = sadd.s32 %s233, 1
      %p237 = scmp.eq.s32.totalorder %s28, 1
      %p238 = scmp.ne.s32.totalorder %s233, %s235
      %p239 = scmp.eq.s32.totalorder %s28, 0
      %p240 = por %p238, %p239
      %p241 = scmp.ne.s32.totalorder %s233, %s235
      %p242 = scmp.eq.s32.totalorder %s33, 1
      %p243 = por %p241, %p242
      %p244 = scmp.ne.s32.totalorder %s235, %s236
      %p245 = scmp.eq.s32.totalorder %s33, 0
      %p246 = por %p244, %p245
      %p247 = scmp.ne.s32.totalorder %s235, %s236
      %p248 = scmp.eq.s32.totalorder %s34, 1
      %p249 = por %p247, %p248
      %p251 = scmp.ne.s32.totalorder %s236, %s250
      %p252 = scmp.eq.s32.totalorder %s34, 0
      %p253 = por %p251, %p252
      %s255 = sadd.s32 %s254, 1
      %p258 = scmp.eq.s32.totalorder %s28, 1
      %p259 = scmp.ne.s32.totalorder %s254, %s256
      %p260 = scmp.eq.s32.totalorder %s28, 0
      %p261 = por %p259, %p260
      %p262 = scmp.ne.s32.totalorder %s254, %s256
      %p263 = scmp.eq.s32.totalorder %s33, 1
      %p264 = por %p262, %p263
      %p265 = scmp.ne.s32.totalorder %s256, %s257
      %p266 = scmp.eq.s32.totalorder %s33, 0
      %p267 = por %p265, %p266
      %p268 = scmp.ne.s32.totalorder %s256, %s257
      %p269 = scmp.eq.s32.totalorder %s34, 1
      %p270 = por %p268, %p269
      %p272 = scmp.ne.s32.totalorder %s257, %s271
      %p273 = scmp.eq.s32.totalorder %s34, 0
      %p274 = por %p272, %p273
      %s276 = sadd.s32 %s275, 1
      %p279 = scmp.eq.s32.totalorder %s28, 1
      %p280 = scmp.ne.s32.totalorder %s275, %s277
      %p281 = scmp.eq.s32.totalorder %s28, 0
      %p282 = por %p280, %p281
      %p283 = scmp.ne.s32.totalorder %s275, %s277
      %p284 = scmp.eq.s32.totalorder %s33, 1
      %p285 = por %p283, %p284
      %p286 = scmp.ne.s32.totalorder %s277, %s278
      %p287 = scmp.eq.s32.totalorder %s33, 0
      %p288 = por %p286, %p287
      %p289 = scmp.ne.s32.totalorder %s277, %s278
      %p290 = scmp.eq.s32.totalorder %s34, 1
      %p291 = por %p289, %p290
      %p293 = scmp.ne.s32.totalorder %s278, %s292
      %p294 = scmp.eq.s32.totalorder %s34, 0
      %p295 = por %p293, %p294
      %s296 = ssub.s32 %s35, %s47
      %s297 = ssub.s32 %s36, %s43
      %s298 = sor.u32 %s296, %s297
      %p299 = scmp.eq.s32.totalorder %s298, 0
      %s301 = sadd.s32 %s300, 1
      %s302 = scalar_select %p299, %s300, %s301
      %p305 = pneg %p299
      %p306 = scmp.eq.s32.totalorder %s28, 1
      %p307 = por %p305, %p306
      %p308 = scmp.ne.s32.totalorder %s300, %s303
      %p309 = scmp.eq.s32.totalorder %s28, 0
      %p310 = por %p308, %p309
      %p311 = scmp.ne.s32.totalorder %s300, %s303
      %p312 = scmp.eq.s32.totalorder %s33, 1
      %p313 = por %p311, %p312
      %p314 = scmp.ne.s32.totalorder %s303, %s304
      %p315 = scmp.eq.s32.totalorder %s33, 0
      %p316 = por %p314, %p315
      %p317 = scmp.ne.s32.totalorder %s303, %s304
      %p318 = scmp.eq.s32.totalorder %s34, 1
      %p319 = por %p317, %p318
      %p321 = scmp.ne.s32.totalorder %s304, %s320
      %p322 = scmp.eq.s32.totalorder %s34, 0
      %p323 = por %p321, %p322
      %p324 = scmp.le.s32.totalorder 1, %s28
      %p325 = scmp.lt.s32.totalorder %s28, 3
      %p326 = pnand %p324, %p325
      %p327 = pneg %p326
      // Predicated region
      $region9: #{tpu_custom_call.1} parent=5 // pred_check
        _
      $region10: #{tpu_custom_call.1} parent=5 // pred_check_branch
        %329 = sbr.rel (%p326) target = $region12
      $region11: #{tpu_custom_call.1} parent=5 // pred_region
        %s330 = ssub.s32 %s28, 1
        // Predicated region
        $region13: #{tpu_custom_call.1} parent=11 // pred_check
          %p331 = pneg %p141
        $region14: #{tpu_custom_call.1} parent=11 // pred_check_branch
          %333 = sbr.rel (%p331) target = $region16
        $region15: #{tpu_custom_call.1} parent=11 // pred_region
          %s335 = ssub.s32 512, 512
          %336 = vsyncadd [#allocation13], %s335
          %s337 = sshll.u32 [#allocation12], 4
          %s338 = int_to_ptr.vmem [resolvable:$true] %s337
          %343 = dma.hbm_to_vmem [thread:$0]  %s3, 512, %s338, [#allocation13], 128, 128, 8
        $region16: #{tpu_custom_call.1} parent=11 // pred_fallthru
          _
        // Predicated region
        $region17: #{tpu_custom_call.1} parent=11 // pred_check
          %p344 = pneg %p162
        $region18: #{tpu_custom_call.1} parent=11 // pred_check_branch
          %346 = sbr.rel (%p344) target = $region20
        $region19: #{tpu_custom_call.1} parent=11 // pred_region
          _
        $region20: #{tpu_custom_call.1} parent=11 // pred_fallthru
          _
        // Predicated region
        $region21: #{tpu_custom_call.1} parent=11 // pred_check
          %p347 = pneg %p183
        $region22: #{tpu_custom_call.1} parent=11 // pred_check_branch
          %349 = sbr.rel (%p347) target = $region24
        $region23: #{tpu_custom_call.1} parent=11 // pred_region
          %s351 = ssub.s32 512, 512
          %352 = vsyncadd [#allocation13], %s351
          %s353 = sshll.u32 [#allocation14], 4
          %s354 = int_to_ptr.vmem [resolvable:$true] %s353
          %359 = dma.hbm_to_vmem [thread:$0]  %s5, 512, %s354, [#allocation13], 128, 128, 8
        $region24: #{tpu_custom_call.1} parent=11 // pred_fallthru
          _
        // Predicated region
        $region25: #{tpu_custom_call.1} parent=11 // pred_check
          %p360 = pneg %p204
        $region26: #{tpu_custom_call.1} parent=11 // pred_check_branch
          %362 = sbr.rel (%p360) target = $region28
        $region27: #{tpu_custom_call.1} parent=11 // pred_region
          _
        $region28: #{tpu_custom_call.1} parent=11 // pred_fallthru
          _
        // Predicated region
        $region29: #{tpu_custom_call.1} parent=11 // pred_check
          %p363 = pneg %p225
        $region30: #{tpu_custom_call.1} parent=11 // pred_check_branch
          %365 = sbr.rel (%p363) target = $region32
        $region31: #{tpu_custom_call.1} parent=11 // pred_region
          %s367 = ssub.s32 512, 512
          %368 = vsyncadd [#allocation16], %s367
          %s369 = sshll.u32 [#allocation15], 4
          %s370 = int_to_ptr.vmem [resolvable:$true] %s369
          %375 = dma.hbm_to_vmem [thread:$0]  %s7, 512, %s370, [#allocation16], 128, 128, 8
        $region32: #{tpu_custom_call.1} parent=11 // pred_fallthru
          _
        // Predicated region
        $region33: #{tpu_custom_call.1} parent=11 // pred_check
          %p376 = pneg %p246
        $region34: #{tpu_custom_call.1} parent=11 // pred_check_branch
          %378 = sbr.rel (%p376) target = $region36
        $region35: #{tpu_custom_call.1} parent=11 // pred_region
          %s380 = ssub.s32 16, 16
          %381 = vsyncadd [#allocation16], %s380
          %s383 = sshll.u32 [#allocation17], 4
          %s384 = int_to_ptr.vmem [resolvable:$true] %s383
          %386 = dma.hbm_to_vmem [thread:$0]  %s8, 16, %s384, [#allocation16]
        $region36: #{tpu_custom_call.1} parent=11 // pred_fallthru
          _
        // Predicated region
        $region37: #{tpu_custom_call.1} parent=11 // pred_check
          %p387 = pneg %p267
        $region38: #{tpu_custom_call.1} parent=11 // pred_check_branch
          %389 = sbr.rel (%p387) target = $region40
        $region39: #{tpu_custom_call.1} parent=11 // pred_region
          _
        $region40: #{tpu_custom_call.1} parent=11 // pred_fallthru
          _
        // Predicated region
        $region41: #{tpu_custom_call.1} parent=11 // pred_check
          %p390 = pneg %p288
        $region42: #{tpu_custom_call.1} parent=11 // pred_check_branch
          %392 = sbr.rel (%p390) target = $region44
        $region43: #{tpu_custom_call.1} parent=11 // pred_region
          _
        $region44: #{tpu_custom_call.1} parent=11 // pred_fallthru
          _
      $region12: #{tpu_custom_call.1} parent=5 // pred_fallthru
        _
      %p393 = scmp.lt.s32.totalorder %s28, 2
      // Predicated region
      $region45: #{tpu_custom_call.1} parent=5 // pred_check
        %p394 = pneg %p393
      $region46: #{tpu_custom_call.1} parent=5 // pred_check_branch
        %396 = sbr.rel (%p394) target = $region48
      $region47: #{tpu_custom_call.1} parent=5 // pred_region
        // Predicated region
        $region49: #{tpu_custom_call.1} parent=47 // pred_check
          %p397 = pneg %p62
        $region50: #{tpu_custom_call.1} parent=47 // pred_check_branch
          %399 = sbr.rel (%p397) target = $region52
        $region51: #{tpu_custom_call.1} parent=47 // pred_region
          %s400 = sand.u32 %s52, 1
          %s401 = scalar_lea.sflag [#allocation7], %s400
          %s402 = sand.u32 %s52, 1
          %s403 = smul.addr %s402, 8
          %s404 = scalar_lea.vmem [#allocation6], %s403
          %s406 = ssub.s32 128, 128
          %407 = vsyncadd %s401, %s406
          %s408 = sadd.s32 %s36, %s35
          %s409 = smul.addr %s408, 128
          %s410 = scalar_lea.hbm %s0, %s409
          %s412 = sshll.u32 %s404, 4
          %s413 = int_to_ptr.vmem [resolvable:$true] %s412
          %415 = dma.hbm_to_vmem [thread:$0]  %s410, 128, %s413, %s401
        $region52: #{tpu_custom_call.1} parent=47 // pred_fallthru
          _
        // Predicated region
        $region53: #{tpu_custom_call.1} parent=47 // pred_check
          %p416 = pneg %p88
        $region54: #{tpu_custom_call.1} parent=47 // pred_check_branch
          %418 = sbr.rel (%p416) target = $region56
        $region55: #{tpu_custom_call.1} parent=47 // pred_region
          %s419 = sand.u32 %s28, 1
          %s420 = scalar_lea.sflag [#allocation10], %s419
          %s421 = sand.u32 %s78, 1
          %s422 = smul.addr %s421, 8
          %s423 = scalar_lea.vmem [#allocation9], %s422
          %s425 = ssub.s32 128, 128
          %426 = vsyncadd %s420, %s425
          %s427 = smul.addr %s35, 128
          %s428 = scalar_lea.hbm %s1, %s427
          %s430 = sshll.u32 %s423, 4
          %s431 = int_to_ptr.vmem [resolvable:$true] %s430
          %433 = dma.hbm_to_vmem [thread:$0]  %s428, 128, %s431, %s420
        $region56: #{tpu_custom_call.1} parent=47 // pred_fallthru
          _
        // Predicated region
        $region57: #{tpu_custom_call.1} parent=47 // pred_check
          %p434 = pneg %p114
        $region58: #{tpu_custom_call.1} parent=47 // pred_check_branch
          %436 = sbr.rel (%p434) target = $region60
        $region59: #{tpu_custom_call.1} parent=47 // pred_region
          %s437 = sand.u32 %s28, 1
          %s438 = scalar_lea.sflag [#allocation10], %s437
          %s439 = sand.u32 %s104, 1
          %s440 = smul.addr %s439, 8
          %s441 = scalar_lea.vmem [#allocation11], %s440
          %s443 = ssub.s32 128, 128
          %444 = vsyncadd %s438, %s443
          %s445 = smul.addr %s35, 128
          %s446 = scalar_lea.hbm %s2, %s445
          %s448 = sshll.u32 %s441, 4
          %s449 = int_to_ptr.vmem [resolvable:$true] %s448
          %451 = dma.hbm_to_vmem [thread:$0]  %s446, 128, %s449, %s438
        $region60: #{tpu_custom_call.1} parent=47 // pred_fallthru
          _
      $region48: #{tpu_custom_call.1} parent=5 // pred_fallthru
        _
      %p452 = scmp.le.s32.totalorder 1, %s28
      %p453 = scmp.lt.s32.totalorder %s28, 3
      %p454 = pnand %p452, %p453
      %p455 = pneg %p454
      // Predicated region
      $region61: #{tpu_custom_call.1} parent=5 // pred_check
        _
      $region62: #{tpu_custom_call.1} parent=5 // pred_check_branch
        %457 = sbr.rel (%p454) target = $region64
      $region63: #{tpu_custom_call.1} parent=5 // pred_region
        %s458 = ssub.s32 %s28, 1
        %s459 = sand.u32 %s55, 1
        %s460 = scalar_lea.sflag [#allocation7], %s459
        %s461 = sand.u32 %s55, 1
        %s462 = smul.addr %s461, 8
        %s463 = scalar_lea.vmem [#allocation6], %s462
        // Predicated region
        $region65: #{tpu_custom_call.1} parent=63 // pred_check
          %p464 = pneg %p68
        $region66: #{tpu_custom_call.1} parent=63 // pred_check_branch
          %466 = sbr.rel (%p464) target = $region68
        $region67: #{tpu_custom_call.1} parent=63 // pred_region
          %467 = dma.done %s460, 128
        $region68: #{tpu_custom_call.1} parent=63 // pred_fallthru
          _
        %s468 = sand.u32 %s33, 1
        %s469 = scalar_lea.sflag [#allocation10], %s468
        %s470 = sand.u32 %s81, 1
        %s471 = smul.addr %s470, 8
        %s472 = scalar_lea.vmem [#allocation9], %s471
        // Predicated region
        $region69: #{tpu_custom_call.1} parent=63 // pred_check
          %p473 = pneg %p94
        $region70: #{tpu_custom_call.1} parent=63 // pred_check_branch
          %475 = sbr.rel (%p473) target = $region72
        $region71: #{tpu_custom_call.1} parent=63 // pred_region
          %476 = dma.done %s469, 128
        $region72: #{tpu_custom_call.1} parent=63 // pred_fallthru
          _
        %s477 = sand.u32 %s33, 1
        %s478 = scalar_lea.sflag [#allocation10], %s477
        %s479 = sand.u32 %s107, 1
        %s480 = smul.addr %s479, 8
        %s481 = scalar_lea.vmem [#allocation11], %s480
        // Predicated region
        $region73: #{tpu_custom_call.1} parent=63 // pred_check
          %p482 = pneg %p120
        $region74: #{tpu_custom_call.1} parent=63 // pred_check_branch
          %484 = sbr.rel (%p482) target = $region76
        $region75: #{tpu_custom_call.1} parent=63 // pred_region
          %485 = dma.done %s478, 128
        $region76: #{tpu_custom_call.1} parent=63 // pred_fallthru
          _
        // Predicated region
        $region77: #{tpu_custom_call.1} parent=63 // pred_check
          %p486 = pneg %p141
        $region78: #{tpu_custom_call.1} parent=63 // pred_check_branch
          %488 = sbr.rel (%p486) target = $region80
        $region79: #{tpu_custom_call.1} parent=63 // pred_region
          %489 = dma.done [#allocation13], 512
        $region80: #{tpu_custom_call.1} parent=63 // pred_fallthru
          _
        // Predicated region
        $region81: #{tpu_custom_call.1} parent=63 // pred_check
          %p490 = pneg %p183
        $region82: #{tpu_custom_call.1} parent=63 // pred_check_branch
          %492 = sbr.rel (%p490) target = $region84
        $region83: #{tpu_custom_call.1} parent=63 // pred_region
          %493 = dma.done [#allocation13], 512
        $region84: #{tpu_custom_call.1} parent=63 // pred_fallthru
          _
        // Predicated region
        $region85: #{tpu_custom_call.1} parent=63 // pred_check
          %p494 = pneg %p225
        $region86: #{tpu_custom_call.1} parent=63 // pred_check_branch
          %496 = sbr.rel (%p494) target = $region88
        $region87: #{tpu_custom_call.1} parent=63 // pred_region
          %497 = dma.done [#allocation16], 512
        $region88: #{tpu_custom_call.1} parent=63 // pred_fallthru
          _
        // Predicated region
        $region89: #{tpu_custom_call.1} parent=63 // pred_check
          %p498 = pneg %p246
        $region90: #{tpu_custom_call.1} parent=63 // pred_check_branch
          %500 = sbr.rel (%p498) target = $region92
        $region91: #{tpu_custom_call.1} parent=63 // pred_region
          %501 = dma.done [#allocation16], 16
        $region92: #{tpu_custom_call.1} parent=63 // pred_fallthru
          _
        %s502 = sand.u32 %s55, 1
        %s503 = scalar_lea.sflag [#allocation7], %s502
        %s504 = sand.u32 %s55, 1
        %s505 = smul.addr %s504, 8
        %s506 = scalar_lea.vmem [#allocation6], %s505
        %p507 = pneg %p68
        %p508 = pneg %p65
        %s509 = sand.u32 %s33, 1
        %s510 = scalar_lea.sflag [#allocation10], %s509
        %s511 = sand.u32 %s81, 1
        %s512 = smul.addr %s511, 8
        %s513 = scalar_lea.vmem [#allocation9], %s512
        %p514 = pneg %p94
        %p515 = pneg %p91
        %s516 = sand.u32 %s33, 1
        %s517 = scalar_lea.sflag [#allocation10], %s516
        %s518 = sand.u32 %s107, 1
        %s519 = smul.addr %s518, 8
        %s520 = scalar_lea.vmem [#allocation11], %s519
        %p521 = pneg %p120
        %p522 = pneg %p117
        %p523 = pneg %p141
        %p524 = pneg %p138
        %p525 = pneg %p162
        %p526 = pneg %p159
        %p527 = pneg %p183
        %p528 = pneg %p180
        %p529 = pneg %p204
        %p530 = pneg %p201
        %p531 = pneg %p225
        %p532 = pneg %p222
        %p533 = pneg %p246
        %p534 = pneg %p243
        %p535 = pneg %p267
        %p536 = pneg %p264
        %p537 = pneg %p288
        %p538 = pneg %p285
        %p539 = pneg %p316
        %p540 = pneg %p313
        %s541 = sand.u32 %s303, 1
        %s542 = scalar_lea.sflag [#allocation8], %s541
        %s543 = sand.u32 %s303, 1
        %s544 = smul.addr %s543, 8
        %s545 = scalar_lea.vmem [#allocation18], %s544
        %p546 = scmp.eq.s32.totalorder %s38, 0
        // Predicated region
        $region93: #{tpu_custom_call.1} parent=63 // pred_check
          %p547 = pneg %p546
        $region94: #{tpu_custom_call.1} parent=63 // pred_check_branch
          %549 = sbr.rel (%p547) target = $region96
        $region95: #{tpu_custom_call.1} parent=63 // pred_region
          %v550 = vld [vmem:[%s472] sm:$0xff]
          %v551 = vld [vmem:[%s481] sm:$0xff]
          %v552 = vld [vmem:[#allocation14] sm:$0xff]
          %v553 = vld [vmem:[#allocation14 + $0x8] sm:$0xff]
          %v554 = vld [vmem:[#allocation14 + $0x10] sm:$0xff]
          %v555 = vld [vmem:[#allocation14 + $0x18] sm:$0xff]
          %v556 = vld [vmem:[%s6] sm:$0x1]
          %v558 = vlaneseq
          %v559 = vshrl.u32 %v558, 7
          %v560 = vsub.s32 0, %v559
          %v561 = vrot.slane %v556, %v560
          %vm563 = vcmask 261120
          %v565 = vsel %vm563, %v550, 0
          %567 = vmatprep.subr.mxu0 0.0
          %568 = vmatpush1.msra.mxu0 %v552
          %569 = vmatprep.subr.mxu0 0.0
          %570 = vmatpush1.msra.mxu0 %v553
          %571 = vmatprep.subr.mxu0 0.0
          %572 = vmatpush1.msra.mxu0 %v554
          %573 = vmatprep.subr.mxu0 0.0
          %574 = vmatpush1.msra.mxu0 %v555
          %575 = vmatprep.subr.mxu0 0.0
          %576 = vmatpush1.msra.mxu0 0.0
          %577 = vmatprep.subr.mxu0 0.0
          %578 = vmatpush1.msra.mxu0 0.0
          %579 = vmatprep.subr.mxu0 0.0
          %580 = vmatpush1.msra.mxu0 0.0
          %581 = vmatprep.subr.mxu0 0.0
          %582 = vmatpush1.msra.mxu0 0.0
          %583 = vmatprep.subr.mxu0 0.0
          %584 = vmatpush1.msra.mxu0 0.0
          %585 = vmatprep.subr.mxu0 0.0
          %586 = vmatpush1.msra.mxu0 0.0
          %587 = vmatprep.subr.mxu0 0.0
          %588 = vmatpush1.msra.mxu0 0.0
          %589 = vmatprep.subr.mxu0 0.0
          %590 = vmatpush1.msra.mxu0 0.0
          %591 = vmatprep.subr.mxu0 0.0
          %592 = vmatpush1.msra.mxu0 0.0
          %593 = vmatprep.subr.mxu0 0.0
          %594 = vmatpush1.msra.mxu0 0.0
          %595 = vmatprep.subr.mxu0 0.0
          %596 = vmatpush1.msra.mxu0 0.0
          %597 = vmatprep.subr.mxu0 0.0
          %598 = vmatpush1.msra.mxu0 0.0
          %599 = vmatprep.subr.mxu0 0.0
          %600 = vmatpush1.msra.mxu0 0.0
          %601 = vmatprep.subr.mxu0 0.0
          %602 = vmatpush1.msra.mxu0 0.0
          %603 = vmatprep.subr.mxu0 0.0
          %604 = vmatpush1.msra.mxu0 0.0
          %605 = vmatprep.subr.mxu0 0.0
          %606 = vmatpush1.msra.mxu0 0.0
          %607 = vmatprep.subr.mxu0 0.0
          %608 = vmatpush1.msra.mxu0 0.0
          %609 = vmatprep.subr.mxu0 0.0
          %610 = vmatpush1.msra.mxu0 0.0
          %611 = vmatprep.subr.mxu0 0.0
          %612 = vmatpush1.msra.mxu0 0.0
          %613 = vmatprep.subr.mxu0 0.0
          %614 = vmatpush1.msra.mxu0 0.0
          %615 = vmatprep.subr.mxu0 0.0
          %616 = vmatpush1.msra.mxu0 0.0
          %617 = vmatprep.subr.mxu0 0.0
          %618 = vmatpush1.msra.mxu0 0.0
          %619 = vmatprep.subr.mxu0 0.0
          %620 = vmatpush1.msra.mxu0 0.0
          %621 = vmatprep.subr.mxu0 0.0
          %622 = vmatpush1.msra.mxu0 0.0
          %623 = vmatprep.subr.mxu0 0.0
          %624 = vmatpush1.msra.mxu0 0.0
          %625 = vmatprep.subr.mxu0 0.0
          %626 = vmatpush1.msra.mxu0 0.0
          %627 = vmatprep.subr.mxu0 0.0
          %628 = vmatpush1.msra.mxu0 0.0
          %629 = vmatprep.subr.mxu0 0.0
          %630 = vmatpush1.msra.mxu0 0.0
          %631 = vmatprep.mubr.f32.mxu0 0.0
          %632 = vmatmul.mubr.f32.gmra.mrb[0].mxu0 %v565
          %v633 = vpop.f32.mrb[0].mxu0
          %v634 = vadd.f32 %v561, %v633
          %v635 = vpop.f32.mrb[0].mxu0
          %636 = vdwg.mxu0
          %vm637 = vcmask 64512
          %638 = vst.msk [vmem:[#allocation2] sm:$0xff] %vm637, %v634
          %640 = vrot.lane.b32.xlu0 %v634, 120
          %v641 = vpop.permute.xlu0 %640
          %s643 = scalar_lea.vmem [#allocation2], 8
          %644 = vst.msk [vmem:[%s643] sm:$0xff] %vm637, %v641
          %645 = vrot.lane.b32.xlu0 %v634, 112
          %v646 = vpop.permute.xlu0 %645
          %s648 = scalar_lea.vmem [#allocation2], 16
          %649 = vst.msk [vmem:[%s648] sm:$0xff] %vm637, %v646
          %650 = vrot.lane.b32.xlu0 %v634, 104
          %v651 = vpop.permute.xlu0 %650
          %s653 = scalar_lea.vmem [#allocation2], 24
          %654 = vst.msk [vmem:[%s653] sm:$0xff] %vm637, %v651
          %v655 = vld [vmem:[#allocation15] sm:$0xff]
          %v656 = vld [vmem:[#allocation15 + $0x8] sm:$0xff]
          %v657 = vld [vmem:[#allocation15 + $0x10] sm:$0xff]
          %v658 = vld [vmem:[#allocation15 + $0x18] sm:$0xff]
          %v659 = vld [vmem:[#allocation17] sm:$0x1]
          %v661 = vlaneseq
          %v662 = vshrl.u32 %v661, 7
          %v663 = vsub.s32 0, %v662
          %v664 = vrot.slane %v659, %v663
          %v667 = vsel %vm563, %v551, 0
          %669 = vmatprep.subr.mxu0 0.0
          %670 = vmatpush1.msra.mxu0 %v655
          %671 = vmatprep.subr.mxu0 0.0
          %672 = vmatpush1.msra.mxu0 %v656
          %673 = vmatprep.subr.mxu0 0.0
          %674 = vmatpush1.msra.mxu0 %v657
          %675 = vmatprep.subr.mxu0 0.0
          %676 = vmatpush1.msra.mxu0 %v658
          %677 = vmatprep.subr.mxu0 0.0
          %678 = vmatpush1.msra.mxu0 0.0
          %679 = vmatprep.subr.mxu0 0.0
          %680 = vmatpush1.msra.mxu0 0.0
          %681 = vmatprep.subr.mxu0 0.0
          %682 = vmatpush1.msra.mxu0 0.0
          %683 = vmatprep.subr.mxu0 0.0
          %684 = vmatpush1.msra.mxu0 0.0
          %685 = vmatprep.subr.mxu0 0.0
          %686 = vmatpush1.msra.mxu0 0.0
          %687 = vmatprep.subr.mxu0 0.0
          %688 = vmatpush1.msra.mxu0 0.0
          %689 = vmatprep.subr.mxu0 0.0
          %690 = vmatpush1.msra.mxu0 0.0
          %691 = vmatprep.subr.mxu0 0.0
          %692 = vmatpush1.msra.mxu0 0.0
          %693 = vmatprep.subr.mxu0 0.0
          %694 = vmatpush1.msra.mxu0 0.0
          %695 = vmatprep.subr.mxu0 0.0
          %696 = vmatpush1.msra.mxu0 0.0
          %697 = vmatprep.subr.mxu0 0.0
          %698 = vmatpush1.msra.mxu0 0.0
          %699 = vmatprep.subr.mxu0 0.0
          %700 = vmatpush1.msra.mxu0 0.0
          %701 = vmatprep.subr.mxu0 0.0
          %702 = vmatpush1.msra.mxu0 0.0
          %703 = vmatprep.subr.mxu0 0.0
          %704 = vmatpush1.msra.mxu0 0.0
          %705 = vmatprep.subr.mxu0 0.0
          %706 = vmatpush1.msra.mxu0 0.0
          %707 = vmatprep.subr.mxu0 0.0
          %708 = vmatpush1.msra.mxu0 0.0
          %709 = vmatprep.subr.mxu0 0.0
          %710 = vmatpush1.msra.mxu0 0.0
          %711 = vmatprep.subr.mxu0 0.0
          %712 = vmatpush1.msra.mxu0 0.0
          %713 = vmatprep.subr.mxu0 0.0
          %714 = vmatpush1.msra.mxu0 0.0
          %715 = vmatprep.subr.mxu0 0.0
          %716 = vmatpush1.msra.mxu0 0.0
          %717 = vmatprep.subr.mxu0 0.0
          %718 = vmatpush1.msra.mxu0 0.0
          %719 = vmatprep.subr.mxu0 0.0
          %720 = vmatpush1.msra.mxu0 0.0
          %721 = vmatprep.subr.mxu0 0.0
          %722 = vmatpush1.msra.mxu0 0.0
          %723 = vmatprep.subr.mxu0 0.0
          %724 = vmatpush1.msra.mxu0 0.0
          %725 = vmatprep.subr.mxu0 0.0
          %726 = vmatpush1.msra.mxu0 0.0
          %727 = vmatprep.subr.mxu0 0.0
          %728 = vmatpush1.msra.mxu0 0.0
          %729 = vmatprep.subr.mxu0 0.0
          %730 = vmatpush1.msra.mxu0 0.0
          %731 = vmatprep.subr.mxu0 0.0
          %732 = vmatpush1.msra.mxu0 0.0
          %733 = vmatprep.mubr.f32.mxu0 0.0
          %734 = vmatmul.mubr.f32.gmra.mrb[0].mxu0 %v667
          %v735 = vpop.f32.mrb[0].mxu0
          %v736 = vadd.f32 %v664, %v735
          %v737 = vpop.f32.mrb[0].mxu0
          %738 = vdwg.mxu0
          %739 = vst.msk [vmem:[#allocation3] sm:$0xff] %vm637, %v736
          %741 = vrot.lane.b32.xlu0 %v736, 120
          %v742 = vpop.permute.xlu0 %741
          %s744 = scalar_lea.vmem [#allocation3], 8
          %745 = vst.msk [vmem:[%s744] sm:$0xff] %vm637, %v742
          %746 = vrot.lane.b32.xlu0 %v736, 112
          %v747 = vpop.permute.xlu0 %746
          %s749 = scalar_lea.vmem [#allocation3], 16
          %750 = vst.msk [vmem:[%s749] sm:$0xff] %vm637, %v747
          %751 = vrot.lane.b32.xlu0 %v736, 104
          %v752 = vpop.permute.xlu0 %751
          %s754 = scalar_lea.vmem [#allocation3], 24
          %755 = vst.msk [vmem:[%s754] sm:$0xff] %vm637, %v752
        $region96: #{tpu_custom_call.1} parent=63 // pred_fallthru
          _
        %v756 = vld [vmem:[%s463] sm:$0xff]
        %v757 = vld [vmem:[#allocation12] sm:$0xff]
        %v758 = vld [vmem:[#allocation12 + $0x8] sm:$0xff]
        %v759 = vld [vmem:[#allocation12 + $0x10] sm:$0xff]
        %v760 = vld [vmem:[#allocation12 + $0x18] sm:$0xff]
        %v761 = vld [vmem:[%s4] sm:$0x1]
        %v763 = vlaneseq
        %v764 = vshrl.u32 %v763, 7
        %v765 = vsub.s32 0, %v764
        %v766 = vrot.slane %v761, %v765
        %vm768 = vcmask 261120
        %v770 = vsel %vm768, %v756, 0
        %772 = vmatprep.subr.mxu0 0.0
        %773 = vmatpush1.msra.mxu0 %v757
        %774 = vmatprep.subr.mxu0 0.0
        %775 = vmatpush1.msra.mxu0 %v758
        %776 = vmatprep.subr.mxu0 0.0
        %777 = vmatpush1.msra.mxu0 %v759
        %778 = vmatprep.subr.mxu0 0.0
        %779 = vmatpush1.msra.mxu0 %v760
        %780 = vmatprep.subr.mxu0 0.0
        %781 = vmatpush1.msra.mxu0 0.0
        %782 = vmatprep.subr.mxu0 0.0
        %783 = vmatpush1.msra.mxu0 0.0
        %784 = vmatprep.subr.mxu0 0.0
        %785 = vmatpush1.msra.mxu0 0.0
        %786 = vmatprep.subr.mxu0 0.0
        %787 = vmatpush1.msra.mxu0 0.0
        %788 = vmatprep.subr.mxu0 0.0
        %789 = vmatpush1.msra.mxu0 0.0
        %790 = vmatprep.subr.mxu0 0.0
        %791 = vmatpush1.msra.mxu0 0.0
        %792 = vmatprep.subr.mxu0 0.0
        %793 = vmatpush1.msra.mxu0 0.0
        %794 = vmatprep.subr.mxu0 0.0
        %795 = vmatpush1.msra.mxu0 0.0
        %796 = vmatprep.subr.mxu0 0.0
        %797 = vmatpush1.msra.mxu0 0.0
        %798 = vmatprep.subr.mxu0 0.0
        %799 = vmatpush1.msra.mxu0 0.0
        %800 = vmatprep.subr.mxu0 0.0
        %801 = vmatpush1.msra.mxu0 0.0
        %802 = vmatprep.subr.mxu0 0.0
        %803 = vmatpush1.msra.mxu0 0.0
        %804 = vmatprep.subr.mxu0 0.0
        %805 = vmatpush1.msra.mxu0 0.0
        %806 = vmatprep.subr.mxu0 0.0
        %807 = vmatpush1.msra.mxu0 0.0
        %808 = vmatprep.subr.mxu0 0.0
        %809 = vmatpush1.msra.mxu0 0.0
        %810 = vmatprep.subr.mxu0 0.0
        %811 = vmatpush1.msra.mxu0 0.0
        %812 = vmatprep.subr.mxu0 0.0
        %813 = vmatpush1.msra.mxu0 0.0
        %814 = vmatprep.subr.mxu0 0.0
        %815 = vmatpush1.msra.mxu0 0.0
        %816 = vmatprep.subr.mxu0 0.0
        %817 = vmatpush1.msra.mxu0 0.0
        %818 = vmatprep.subr.mxu0 0.0
        %819 = vmatpush1.msra.mxu0 0.0
        %820 = vmatprep.subr.mxu0 0.0
        %821 = vmatpush1.msra.mxu0 0.0
        %822 = vmatprep.subr.mxu0 0.0
        %823 = vmatpush1.msra.mxu0 0.0
        %824 = vmatprep.subr.mxu0 0.0
        %825 = vmatpush1.msra.mxu0 0.0
        %826 = vmatprep.subr.mxu0 0.0
        %827 = vmatpush1.msra.mxu0 0.0
        %828 = vmatprep.subr.mxu0 0.0
        %829 = vmatpush1.msra.mxu0 0.0
        %830 = vmatprep.subr.mxu0 0.0
        %831 = vmatpush1.msra.mxu0 0.0
        %832 = vmatprep.subr.mxu0 0.0
        %833 = vmatpush1.msra.mxu0 0.0
        %834 = vmatprep.subr.mxu0 0.0
        %835 = vmatpush1.msra.mxu0 0.0
        %836 = vmatprep.mubr.f32.mxu0 0.0
        %837 = vmatmul.mubr.f32.gmra.mrb[0].mxu0 %v770
        %v838 = vpop.f32.mrb[0].mxu0
        %v839 = vadd.f32 %v766, %v838
        %v840 = vpop.f32.mrb[0].mxu0
        %841 = vdwg.mxu0
        %vm842 = vcmask 64512
        %843 = vst.msk [vmem:[#allocation4] sm:$0xff] %vm842, %v839
        %845 = vrot.lane.b32.xlu0 %v839, 120
        %v846 = vpop.permute.xlu0 %845
        %s848 = scalar_lea.vmem [#allocation4], 8
        %849 = vst.msk [vmem:[%s848] sm:$0xff] %vm842, %v846
        %850 = vrot.lane.b32.xlu0 %v839, 112
        %v851 = vpop.permute.xlu0 %850
        %s853 = scalar_lea.vmem [#allocation4], 16
        %854 = vst.msk [vmem:[%s853] sm:$0xff] %vm842, %v851
        %855 = vrot.lane.b32.xlu0 %v839, 104
        %v856 = vpop.permute.xlu0 %855
        %s858 = scalar_lea.vmem [#allocation4], 24
        %859 = vst.msk [vmem:[%s858] sm:$0xff] %vm842, %v856
        %v860 = vld [vmem:[#allocation4] sm:$0xff]
        %v861 = vld [vmem:[#allocation4 + $0x8] sm:$0xff]
        %v862 = vld [vmem:[#allocation4 + $0x10] sm:$0xff]
        %v863 = vld [vmem:[#allocation4 + $0x18] sm:$0xff]
        %v864 = vld [vmem:[#allocation2] sm:$0xff]
        %v865 = vld [vmem:[#allocation2 + $0x8] sm:$0xff]
        %v866 = vld [vmem:[#allocation2 + $0x10] sm:$0xff]
        %v867 = vld [vmem:[#allocation2 + $0x18] sm:$0xff]
        %v868 = vld [vmem:[#allocation3] sm:$0xff]
        %v869 = vld [vmem:[#allocation3 + $0x8] sm:$0xff]
        %v870 = vld [vmem:[#allocation3 + $0x10] sm:$0xff]
        %v871 = vld [vmem:[#allocation3 + $0x18] sm:$0xff]
        %v873 = vsel %vm842, %v860, 0
        %v876 = vsel %vm842, %v864, 0
        %878 = vmatprep.subr.mxu0 0.0
        %879 = vmatpush1.xpose.msra.mxu0 %v876
        %880 = vmatprep.subr.mxu0 0.0
        %881 = vmatpush1.xpose.msra.mxu0 0.0
        %882 = vmatprep.subr.mxu0 0.0
        %883 = vmatpush1.xpose.msra.mxu0 0.0
        %884 = vmatprep.subr.mxu0 0.0
        %885 = vmatpush1.xpose.msra.mxu0 0.0
        %886 = vmatprep.subr.mxu0 0.0
        %887 = vmatpush1.xpose.msra.mxu0 0.0
        %888 = vmatprep.subr.mxu0 0.0
        %889 = vmatpush1.xpose.msra.mxu0 0.0
        %890 = vmatprep.subr.mxu0 0.0
        %891 = vmatpush1.xpose.msra.mxu0 0.0
        %892 = vmatprep.subr.mxu0 0.0
        %893 = vmatpush1.xpose.msra.mxu0 0.0
        %894 = vmatprep.subr.mxu0 0.0
        %895 = vmatpush1.xpose.msra.mxu0 0.0
        %896 = vmatprep.subr.mxu0 0.0
        %897 = vmatpush1.xpose.msra.mxu0 0.0
        %898 = vmatprep.subr.mxu0 0.0
        %899 = vmatpush1.xpose.msra.mxu0 0.0
        %900 = vmatprep.subr.mxu0 0.0
        %901 = vmatpush1.xpose.msra.mxu0 0.0
        %902 = vmatprep.subr.mxu0 0.0
        %903 = vmatpush1.xpose.msra.mxu0 0.0
        %904 = vmatprep.subr.mxu0 0.0
        %905 = vmatpush1.xpose.msra.mxu0 0.0
        %906 = vmatprep.subr.mxu0 0.0
        %907 = vmatpush1.xpose.msra.mxu0 0.0
        %908 = vmatprep.subr.mxu0 0.0
        %909 = vmatpush1.xpose.msra.mxu0 0.0
        %910 = vmatprep.subr.mxu0 0.0
        %911 = vmatpush1.xpose.msra.mxu0 0.0
        %912 = vmatprep.subr.mxu0 0.0
        %913 = vmatpush1.xpose.msra.mxu0 0.0
        %914 = vmatprep.subr.mxu0 0.0
        %915 = vmatpush1.xpose.msra.mxu0 0.0
        %916 = vmatprep.subr.mxu0 0.0
        %917 = vmatpush1.xpose.msra.mxu0 0.0
        %918 = vmatprep.subr.mxu0 0.0
        %919 = vmatpush1.xpose.msra.mxu0 0.0
        %920 = vmatprep.subr.mxu0 0.0
        %921 = vmatpush1.xpose.msra.mxu0 0.0
        %922 = vmatprep.subr.mxu0 0.0
        %923 = vmatpush1.xpose.msra.mxu0 0.0
        %924 = vmatprep.subr.mxu0 0.0
        %925 = vmatpush1.xpose.msra.mxu0 0.0
        %926 = vmatprep.subr.mxu0 0.0
        %927 = vmatpush1.xpose.msra.mxu0 0.0
        %928 = vmatprep.subr.mxu0 0.0
        %929 = vmatpush1.xpose.msra.mxu0 0.0
        %930 = vmatprep.subr.mxu0 0.0
        %931 = vmatpush1.xpose.msra.mxu0 0.0
        %932 = vmatprep.subr.mxu0 0.0
        %933 = vmatpush1.xpose.msra.mxu0 0.0
        %934 = vmatprep.subr.mxu0 0.0
        %935 = vmatpush1.xpose.msra.mxu0 0.0
        %936 = vmatprep.subr.mxu0 0.0
        %937 = vmatpush1.xpose.msra.mxu0 0.0
        %938 = vmatprep.subr.mxu0 0.0
        %939 = vmatpush1.xpose.msra.mxu0 0.0
        %940 = vmatprep.subr.mxu0 0.0
        %941 = vmatpush1.xpose.msra.mxu0 0.0
        %942 = vmatprep.mubr.f32.mxu0 0.0
        %943 = vmatmul.mubr.f32.gmra.mrb[0].mxu0 %v873
        %v944 = vpop.f32.mrb[0].mxu0
        %v945 = vadd.f32 0.0, %v944
        %v946 = vpop.f32.mrb[0].mxu0
        %947 = vdwg.mxu0
        %v949 = vsel %vm842, %v861, 0
        %v952 = vsel %vm842, %v865, 0
        %954 = vmatprep.subr.mxu0 0.0
        %955 = vmatpush1.xpose.msra.mxu0 %v952
        %956 = vmatprep.subr.mxu0 0.0
        %957 = vmatpush1.xpose.msra.mxu0 0.0
        %958 = vmatprep.subr.mxu0 0.0
        %959 = vmatpush1.xpose.msra.mxu0 0.0
        %960 = vmatprep.subr.mxu0 0.0
        %961 = vmatpush1.xpose.msra.mxu0 0.0
        %962 = vmatprep.subr.mxu0 0.0
        %963 = vmatpush1.xpose.msra.mxu0 0.0
        %964 = vmatprep.subr.mxu0 0.0
        %965 = vmatpush1.xpose.msra.mxu0 0.0
        %966 = vmatprep.subr.mxu0 0.0
        %967 = vmatpush1.xpose.msra.mxu0 0.0
        %968 = vmatprep.subr.mxu0 0.0
        %969 = vmatpush1.xpose.msra.mxu0 0.0
        %970 = vmatprep.subr.mxu0 0.0
        %971 = vmatpush1.xpose.msra.mxu0 0.0
        %972 = vmatprep.subr.mxu0 0.0
        %973 = vmatpush1.xpose.msra.mxu0 0.0
        %974 = vmatprep.subr.mxu0 0.0
        %975 = vmatpush1.xpose.msra.mxu0 0.0
        %976 = vmatprep.subr.mxu0 0.0
        %977 = vmatpush1.xpose.msra.mxu0 0.0
        %978 = vmatprep.subr.mxu0 0.0
        %979 = vmatpush1.xpose.msra.mxu0 0.0
        %980 = vmatprep.subr.mxu0 0.0
        %981 = vmatpush1.xpose.msra.mxu0 0.0
        %982 = vmatprep.subr.mxu0 0.0
        %983 = vmatpush1.xpose.msra.mxu0 0.0
        %984 = vmatprep.subr.mxu0 0.0
        %985 = vmatpush1.xpose.msra.mxu0 0.0
        %986 = vmatprep.subr.mxu0 0.0
        %987 = vmatpush1.xpose.msra.mxu0 0.0
        %988 = vmatprep.subr.mxu0 0.0
        %989 = vmatpush1.xpose.msra.mxu0 0.0
        %990 = vmatprep.subr.mxu0 0.0
        %991 = vmatpush1.xpose.msra.mxu0 0.0
        %992 = vmatprep.subr.mxu0 0.0
        %993 = vmatpush1.xpose.msra.mxu0 0.0
        %994 = vmatprep.subr.mxu0 0.0
        %995 = vmatpush1.xpose.msra.mxu0 0.0
        %996 = vmatprep.subr.mxu0 0.0
        %997 = vmatpush1.xpose.msra.mxu0 0.0
        %998 = vmatprep.subr.mxu0 0.0
        %999 = vmatpush1.xpose.msra.mxu0 0.0
        %1000 = vmatprep.subr.mxu0 0.0
        %1001 = vmatpush1.xpose.msra.mxu0 0.0
        %1002 = vmatprep.subr.mxu0 0.0
        %1003 = vmatpush1.xpose.msra.mxu0 0.0
        %1004 = vmatprep.subr.mxu0 0.0
        %1005 = vmatpush1.xpose.msra.mxu0 0.0
        %1006 = vmatprep.subr.mxu0 0.0
        %1007 = vmatpush1.xpose.msra.mxu0 0.0
        %1008 = vmatprep.subr.mxu0 0.0
        %1009 = vmatpush1.xpose.msra.mxu0 0.0
        %1010 = vmatprep.subr.mxu0 0.0
        %1011 = vmatpush1.xpose.msra.mxu0 0.0
        %1012 = vmatprep.subr.mxu0 0.0
        %1013 = vmatpush1.xpose.msra.mxu0 0.0
        %1014 = vmatprep.subr.mxu0 0.0
        %1015 = vmatpush1.xpose.msra.mxu0 0.0
        %1016 = vmatprep.subr.mxu0 0.0
        %1017 = vmatpush1.xpose.msra.mxu0 0.0
        %1018 = vmatprep.mubr.f32.mxu0 0.0
        %1019 = vmatmul.mubr.f32.gmra.mrb[0].mxu0 %v949
        %v1020 = vpop.f32.mrb[0].mxu0
        %v1021 = vadd.f32 0.0, %v1020
        %v1022 = vpop.f32.mrb[0].mxu0
        %1023 = vdwg.mxu0
        %v1025 = vsel %vm842, %v862, 0
        %v1028 = vsel %vm842, %v866, 0
        %1030 = vmatprep.subr.mxu0 0.0
        %1031 = vmatpush1.xpose.msra.mxu0 %v1028
        %1032 = vmatprep.subr.mxu0 0.0
        %1033 = vmatpush1.xpose.msra.mxu0 0.0
        %1034 = vmatprep.subr.mxu0 0.0
        %1035 = vmatpush1.xpose.msra.mxu0 0.0
        %1036 = vmatprep.subr.mxu0 0.0
        %1037 = vmatpush1.xpose.msra.mxu0 0.0
        %1038 = vmatprep.subr.mxu0 0.0
        %1039 = vmatpush1.xpose.msra.mxu0 0.0
        %1040 = vmatprep.subr.mxu0 0.0
        %1041 = vmatpush1.xpose.msra.mxu0 0.0
        %1042 = vmatprep.subr.mxu0 0.0
        %1043 = vmatpush1.xpose.msra.mxu0 0.0
        %1044 = vmatprep.subr.mxu0 0.0
        %1045 = vmatpush1.xpose.msra.mxu0 0.0
        %1046 = vmatprep.subr.mxu0 0.0
        %1047 = vmatpush1.xpose.msra.mxu0 0.0
        %1048 = vmatprep.subr.mxu0 0.0
        %1049 = vmatpush1.xpose.msra.mxu0 0.0
        %1050 = vmatprep.subr.mxu0 0.0
        %1051 = vmatpush1.xpose.msra.mxu0 0.0
        %1052 = vmatprep.subr.mxu0 0.0
        %1053 = vmatpush1.xpose.msra.mxu0 0.0
        %1054 = vmatprep.subr.mxu0 0.0
        %1055 = vmatpush1.xpose.msra.mxu0 0.0
        %1056 = vmatprep.subr.mxu0 0.0
        %1057 = vmatpush1.xpose.msra.mxu0 0.0
        %1058 = vmatprep.subr.mxu0 0.0
        %1059 = vmatpush1.xpose.msra.mxu0 0.0
        %1060 = vmatprep.subr.mxu0 0.0
        %1061 = vmatpush1.xpose.msra.mxu0 0.0
        %1062 = vmatprep.subr.mxu0 0.0
        %1063 = vmatpush1.xpose.msra.mxu0 0.0
        %1064 = vmatprep.subr.mxu0 0.0
        %1065 = vmatpush1.xpose.msra.mxu0 0.0
        %1066 = vmatprep.subr.mxu0 0.0
        %1067 = vmatpush1.xpose.msra.mxu0 0.0
        %1068 = vmatprep.subr.mxu0 0.0
        %1069 = vmatpush1.xpose.msra.mxu0 0.0
        %1070 = vmatprep.subr.mxu0 0.0
        %1071 = vmatpush1.xpose.msra.mxu0 0.0
        %1072 = vmatprep.subr.mxu0 0.0
        %1073 = vmatpush1.xpose.msra.mxu0 0.0
        %1074 = vmatprep.subr.mxu0 0.0
        %1075 = vmatpush1.xpose.msra.mxu0 0.0
        %1076 = vmatprep.subr.mxu0 0.0
        %1077 = vmatpush1.xpose.msra.mxu0 0.0
        %1078 = vmatprep.subr.mxu0 0.0
        %1079 = vmatpush1.xpose.msra.mxu0 0.0
        %1080 = vmatprep.subr.mxu0 0.0
        %1081 = vmatpush1.xpose.msra.mxu0 0.0
        %1082 = vmatprep.subr.mxu0 0.0
        %1083 = vmatpush1.xpose.msra.mxu0 0.0
        %1084 = vmatprep.subr.mxu0 0.0
        %1085 = vmatpush1.xpose.msra.mxu0 0.0
        %1086 = vmatprep.subr.mxu0 0.0
        %1087 = vmatpush1.xpose.msra.mxu0 0.0
        %1088 = vmatprep.subr.mxu0 0.0
        %1089 = vmatpush1.xpose.msra.mxu0 0.0
        %1090 = vmatprep.subr.mxu0 0.0
        %1091 = vmatpush1.xpose.msra.mxu0 0.0
        %1092 = vmatprep.subr.mxu0 0.0
        %1093 = vmatpush1.xpose.msra.mxu0 0.0
        %1094 = vmatprep.mubr.f32.mxu0 0.0
        %1095 = vmatmul.mubr.f32.gmra.mrb[0].mxu0 %v1025
        %v1096 = vpop.f32.mrb[0].mxu0
        %v1097 = vadd.f32 0.0, %v1096
        %v1098 = vpop.f32.mrb[0].mxu0
        %1099 = vdwg.mxu0
        %v1101 = vsel %vm842, %v863, 0
        %v1104 = vsel %vm842, %v867, 0
        %1106 = vmatprep.subr.mxu0 0.0
        %1107 = vmatpush1.xpose.msra.mxu0 %v1104
        %1108 = vmatprep.subr.mxu0 0.0
        %1109 = vmatpush1.xpose.msra.mxu0 0.0
        %1110 = vmatprep.subr.mxu0 0.0
        %1111 = vmatpush1.xpose.msra.mxu0 0.0
        %1112 = vmatprep.subr.mxu0 0.0
        %1113 = vmatpush1.xpose.msra.mxu0 0.0
        %1114 = vmatprep.subr.mxu0 0.0
        %1115 = vmatpush1.xpose.msra.mxu0 0.0
        %1116 = vmatprep.subr.mxu0 0.0
        %1117 = vmatpush1.xpose.msra.mxu0 0.0
        %1118 = vmatprep.subr.mxu0 0.0
        %1119 = vmatpush1.xpose.msra.mxu0 0.0
        %1120 = vmatprep.subr.mxu0 0.0
        %1121 = vmatpush1.xpose.msra.mxu0 0.0
        %1122 = vmatprep.subr.mxu0 0.0
        %1123 = vmatpush1.xpose.msra.mxu0 0.0
        %1124 = vmatprep.subr.mxu0 0.0
        %1125 = vmatpush1.xpose.msra.mxu0 0.0
        %1126 = vmatprep.subr.mxu0 0.0
        %1127 = vmatpush1.xpose.msra.mxu0 0.0
        %1128 = vmatprep.subr.mxu0 0.0
        %1129 = vmatpush1.xpose.msra.mxu0 0.0
        %1130 = vmatprep.subr.mxu0 0.0
        %1131 = vmatpush1.xpose.msra.mxu0 0.0
        %1132 = vmatprep.subr.mxu0 0.0
        %1133 = vmatpush1.xpose.msra.mxu0 0.0
        %1134 = vmatprep.subr.mxu0 0.0
        %1135 = vmatpush1.xpose.msra.mxu0 0.0
        %1136 = vmatprep.subr.mxu0 0.0
        %1137 = vmatpush1.xpose.msra.mxu0 0.0
        %1138 = vmatprep.subr.mxu0 0.0
        %1139 = vmatpush1.xpose.msra.mxu0 0.0
        %1140 = vmatprep.subr.mxu0 0.0
        %1141 = vmatpush1.xpose.msra.mxu0 0.0
        %1142 = vmatprep.subr.mxu0 0.0
        %1143 = vmatpush1.xpose.msra.mxu0 0.0
        %1144 = vmatprep.subr.mxu0 0.0
        %1145 = vmatpush1.xpose.msra.mxu0 0.0
        %1146 = vmatprep.subr.mxu0 0.0
        %1147 = vmatpush1.xpose.msra.mxu0 0.0
        %1148 = vmatprep.subr.mxu0 0.0
        %1149 = vmatpush1.xpose.msra.mxu0 0.0
        %1150 = vmatprep.subr.mxu0 0.0
        %1151 = vmatpush1.xpose.msra.mxu0 0.0
        %1152 = vmatprep.subr.mxu0 0.0
        %1153 = vmatpush1.xpose.msra.mxu0 0.0
        %1154 = vmatprep.subr.mxu0 0.0
        %1155 = vmatpush1.xpose.msra.mxu0 0.0
        %1156 = vmatprep.subr.mxu0 0.0
        %1157 = vmatpush1.xpose.msra.mxu0 0.0
        %1158 = vmatprep.subr.mxu0 0.0
        %1159 = vmatpush1.xpose.msra.mxu0 0.0
        %1160 = vmatprep.subr.mxu0 0.0
        %1161 = vmatpush1.xpose.msra.mxu0 0.0
        %1162 = vmatprep.subr.mxu0 0.0
        %1163 = vmatpush1.xpose.msra.mxu0 0.0
        %1164 = vmatprep.subr.mxu0 0.0
        %1165 = vmatpush1.xpose.msra.mxu0 0.0
        %1166 = vmatprep.subr.mxu0 0.0
        %1167 = vmatpush1.xpose.msra.mxu0 0.0
        %1168 = vmatprep.subr.mxu0 0.0
        %1169 = vmatpush1.xpose.msra.mxu0 0.0
        %1170 = vmatprep.mubr.f32.mxu0 0.0
        %1171 = vmatmul.mubr.f32.gmra.mrb[0].mxu0 %v1101
        %v1172 = vpop.f32.mrb[0].mxu0
        %v1173 = vadd.f32 0.0, %v1172
        %v1174 = vpop.f32.mrb[0].mxu0
        %1175 = vdwg.mxu0
        %v1176 = vsel %vm842, %v945, -inf
        %1177 = vmax.xlane.f32.xlu0 %v1176
        %v1178 = vpop.xlane.xlu0 %1177
        %v1179 = vsel %vm842, %v1021, -inf
        %1180 = vmax.xlane.f32.xlu0 %v1179
        %v1181 = vpop.xlane.xlu0 %1180
        %v1182 = vsel %vm842, %v1097, -inf
        %1183 = vmax.xlane.f32.xlu0 %v1182
        %v1184 = vpop.xlane.xlu0 %1183
        %v1185 = vsel %vm842, %v1173, -inf
        %1186 = vmax.xlane.f32.xlu0 %v1185
        %v1187 = vpop.xlane.xlu0 %1186
        %v1188 = vsub.f32 -inf, %v1178
        %v1189 = vsub.f32 -inf, %v1181
        %v1190 = vsub.f32 -inf, %v1184
        %v1191 = vsub.f32 -inf, %v1187
        %v1192 = vmul.f32 %v1188, 1.442695
        %v1193 = vpow.pop %v1192
        %v1194 = vmul.f32 %v1189, 1.442695
        %v1195 = vpow.pop %v1194
        %v1196 = vmul.f32 %v1190, 1.442695
        %v1197 = vpow.pop %v1196
        %v1198 = vmul.f32 %v1191, 1.442695
        %v1199 = vpow.pop %v1198
        %v1200 = vsub.f32 %v945, %v1178
        %v1201 = vsub.f32 %v1021, %v1181
        %v1202 = vsub.f32 %v1097, %v1184
        %v1203 = vsub.f32 %v1173, %v1187
        %v1204 = vmul.f32 %v1200, 1.442695
        %v1205 = vpow.pop %v1204
        %v1206 = vmul.f32 %v1201, 1.442695
        %v1207 = vpow.pop %v1206
        %v1208 = vmul.f32 %v1202, 1.442695
        %v1209 = vpow.pop %v1208
        %v1210 = vmul.f32 %v1203, 1.442695
        %v1211 = vpow.pop %v1210
        %v1212 = vmul.f32 %v1193, 0.0
        %v1213 = vmul.f32 %v1195, 0.0
        %v1214 = vmul.f32 %v1197, 0.0
        %v1215 = vmul.f32 %v1199, 0.0
        %v1216 = vsel %vm842, %v1205, 0.0
        %1217 = vadd.xlane.f32.xlu0 %v1216
        %v1218 = vpop.xlane.xlu0 %1217
        %v1219 = vsel %vm842, %v1207, 0.0
        %1220 = vadd.xlane.f32.xlu0 %v1219
        %v1221 = vpop.xlane.xlu0 %1220
        %v1222 = vsel %vm842, %v1209, 0.0
        %1223 = vadd.xlane.f32.xlu0 %v1222
        %v1224 = vpop.xlane.xlu0 %1223
        %v1225 = vsel %vm842, %v1211, 0.0
        %1226 = vadd.xlane.f32.xlu0 %v1225
        %v1227 = vpop.xlane.xlu0 %1226
        %v1228 = vadd.f32 %v1212, %v1218
        %v1229 = vadd.f32 %v1213, %v1221
        %v1230 = vadd.f32 %v1214, %v1224
        %v1231 = vadd.f32 %v1215, %v1227
        %v1233 = vsel %vm842, %v1205, 0
        %1235 = vmatprep.subr.mxu0 0.0
        %1236 = vmatpush1.msra.mxu0 %v868
        %1237 = vmatprep.subr.mxu0 0.0
        %1238 = vmatpush1.msra.mxu0 0.0
        %1239 = vmatprep.subr.mxu0 0.0
        %1240 = vmatpush1.msra.mxu0 0.0
        %1241 = vmatprep.subr.mxu0 0.0
        %1242 = vmatpush1.msra.mxu0 0.0
        %1243 = vmatprep.subr.mxu0 0.0
        %1244 = vmatpush1.msra.mxu0 0.0
        %1245 = vmatprep.subr.mxu0 0.0
        %1246 = vmatpush1.msra.mxu0 0.0
        %1247 = vmatprep.subr.mxu0 0.0
        %1248 = vmatpush1.msra.mxu0 0.0
        %1249 = vmatprep.subr.mxu0 0.0
        %1250 = vmatpush1.msra.mxu0 0.0
        %1251 = vmatprep.subr.mxu0 0.0
        %1252 = vmatpush1.msra.mxu0 0.0
        %1253 = vmatprep.subr.mxu0 0.0
        %1254 = vmatpush1.msra.mxu0 0.0
        %1255 = vmatprep.subr.mxu0 0.0
        %1256 = vmatpush1.msra.mxu0 0.0
        %1257 = vmatprep.subr.mxu0 0.0
        %1258 = vmatpush1.msra.mxu0 0.0
        %1259 = vmatprep.subr.mxu0 0.0
        %1260 = vmatpush1.msra.mxu0 0.0
        %1261 = vmatprep.subr.mxu0 0.0
        %1262 = vmatpush1.msra.mxu0 0.0
        %1263 = vmatprep.subr.mxu0 0.0
        %1264 = vmatpush1.msra.mxu0 0.0
        %1265 = vmatprep.subr.mxu0 0.0
        %1266 = vmatpush1.msra.mxu0 0.0
        %1267 = vmatprep.subr.mxu0 0.0
        %1268 = vmatpush1.msra.mxu0 0.0
        %1269 = vmatprep.subr.mxu0 0.0
        %1270 = vmatpush1.msra.mxu0 0.0
        %1271 = vmatprep.subr.mxu0 0.0
        %1272 = vmatpush1.msra.mxu0 0.0
        %1273 = vmatprep.subr.mxu0 0.0
        %1274 = vmatpush1.msra.mxu0 0.0
        %1275 = vmatprep.subr.mxu0 0.0
        %1276 = vmatpush1.msra.mxu0 0.0
        %1277 = vmatprep.subr.mxu0 0.0
        %1278 = vmatpush1.msra.mxu0 0.0
        %1279 = vmatprep.subr.mxu0 0.0
        %1280 = vmatpush1.msra.mxu0 0.0
        %1281 = vmatprep.subr.mxu0 0.0
        %1282 = vmatpush1.msra.mxu0 0.0
        %1283 = vmatprep.subr.mxu0 0.0
        %1284 = vmatpush1.msra.mxu0 0.0
        %1285 = vmatprep.subr.mxu0 0.0
        %1286 = vmatpush1.msra.mxu0 0.0
        %1287 = vmatprep.subr.mxu0 0.0
        %1288 = vmatpush1.msra.mxu0 0.0
        %1289 = vmatprep.subr.mxu0 0.0
        %1290 = vmatpush1.msra.mxu0 0.0
        %1291 = vmatprep.subr.mxu0 0.0
        %1292 = vmatpush1.msra.mxu0 0.0
        %1293 = vmatprep.subr.mxu0 0.0
        %1294 = vmatpush1.msra.mxu0 0.0
        %1295 = vmatprep.subr.mxu0 0.0
        %1296 = vmatpush1.msra.mxu0 0.0
        %1297 = vmatprep.subr.mxu0 0.0
        %1298 = vmatpush1.msra.mxu0 0.0
        %1299 = vmatprep.mubr.f32.mxu0 0.0
        %1300 = vmatmul.mubr.f32.gmra.mrb[0].mxu0 %v1233
        %v1301 = vpop.f32.mrb[0].mxu0
        %v1302 = vadd.f32 0.0, %v1301
        %v1303 = vpop.f32.mrb[0].mxu0
        %1304 = vdwg.mxu0
        %v1306 = vsel %vm842, %v1207, 0
        %1308 = vmatprep.subr.mxu0 0.0
        %1309 = vmatpush1.msra.mxu0 %v869
        %1310 = vmatprep.subr.mxu0 0.0
        %1311 = vmatpush1.msra.mxu0 0.0
        %1312 = vmatprep.subr.mxu0 0.0
        %1313 = vmatpush1.msra.mxu0 0.0
        %1314 = vmatprep.subr.mxu0 0.0
        %1315 = vmatpush1.msra.mxu0 0.0
        %1316 = vmatprep.subr.mxu0 0.0
        %1317 = vmatpush1.msra.mxu0 0.0
        %1318 = vmatprep.subr.mxu0 0.0
        %1319 = vmatpush1.msra.mxu0 0.0
        %1320 = vmatprep.subr.mxu0 0.0
        %1321 = vmatpush1.msra.mxu0 0.0
        %1322 = vmatprep.subr.mxu0 0.0
        %1323 = vmatpush1.msra.mxu0 0.0
        %1324 = vmatprep.subr.mxu0 0.0
        %1325 = vmatpush1.msra.mxu0 0.0
        %1326 = vmatprep.subr.mxu0 0.0
        %1327 = vmatpush1.msra.mxu0 0.0
        %1328 = vmatprep.subr.mxu0 0.0
        %1329 = vmatpush1.msra.mxu0 0.0
        %1330 = vmatprep.subr.mxu0 0.0
        %1331 = vmatpush1.msra.mxu0 0.0
        %1332 = vmatprep.subr.mxu0 0.0
        %1333 = vmatpush1.msra.mxu0 0.0
        %1334 = vmatprep.subr.mxu0 0.0
        %1335 = vmatpush1.msra.mxu0 0.0
        %1336 = vmatprep.subr.mxu0 0.0
        %1337 = vmatpush1.msra.mxu0 0.0
        %1338 = vmatprep.subr.mxu0 0.0
        %1339 = vmatpush1.msra.mxu0 0.0
        %1340 = vmatprep.subr.mxu0 0.0
        %1341 = vmatpush1.msra.mxu0 0.0
        %1342 = vmatprep.subr.mxu0 0.0
        %1343 = vmatpush1.msra.mxu0 0.0
        %1344 = vmatprep.subr.mxu0 0.0
        %1345 = vmatpush1.msra.mxu0 0.0
        %1346 = vmatprep.subr.mxu0 0.0
        %1347 = vmatpush1.msra.mxu0 0.0
        %1348 = vmatprep.subr.mxu0 0.0
        %1349 = vmatpush1.msra.mxu0 0.0
        %1350 = vmatprep.subr.mxu0 0.0
        %1351 = vmatpush1.msra.mxu0 0.0
        %1352 = vmatprep.subr.mxu0 0.0
        %1353 = vmatpush1.msra.mxu0 0.0
        %1354 = vmatprep.subr.mxu0 0.0
        %1355 = vmatpush1.msra.mxu0 0.0
        %1356 = vmatprep.subr.mxu0 0.0
        %1357 = vmatpush1.msra.mxu0 0.0
        %1358 = vmatprep.subr.mxu0 0.0
        %1359 = vmatpush1.msra.mxu0 0.0
        %1360 = vmatprep.subr.mxu0 0.0
        %1361 = vmatpush1.msra.mxu0 0.0
        %1362 = vmatprep.subr.mxu0 0.0
        %1363 = vmatpush1.msra.mxu0 0.0
        %1364 = vmatprep.subr.mxu0 0.0
        %1365 = vmatpush1.msra.mxu0 0.0
        %1366 = vmatprep.subr.mxu0 0.0
        %1367 = vmatpush1.msra.mxu0 0.0
        %1368 = vmatprep.subr.mxu0 0.0
        %1369 = vmatpush1.msra.mxu0 0.0
        %1370 = vmatprep.subr.mxu0 0.0
        %1371 = vmatpush1.msra.mxu0 0.0
        %1372 = vmatprep.mubr.f32.mxu0 0.0
        %1373 = vmatmul.mubr.f32.gmra.mrb[0].mxu0 %v1306
        %v1374 = vpop.f32.mrb[0].mxu0
        %v1375 = vadd.f32 0.0, %v1374
        %v1376 = vpop.f32.mrb[0].mxu0
        %1377 = vdwg.mxu0
        %v1379 = vsel %vm842, %v1209, 0
        %1381 = vmatprep.subr.mxu0 0.0
        %1382 = vmatpush1.msra.mxu0 %v870
        %1383 = vmatprep.subr.mxu0 0.0
        %1384 = vmatpush1.msra.mxu0 0.0
        %1385 = vmatprep.subr.mxu0 0.0
        %1386 = vmatpush1.msra.mxu0 0.0
        %1387 = vmatprep.subr.mxu0 0.0
        %1388 = vmatpush1.msra.mxu0 0.0
        %1389 = vmatprep.subr.mxu0 0.0
        %1390 = vmatpush1.msra.mxu0 0.0
        %1391 = vmatprep.subr.mxu0 0.0
        %1392 = vmatpush1.msra.mxu0 0.0
        %1393 = vmatprep.subr.mxu0 0.0
        %1394 = vmatpush1.msra.mxu0 0.0
        %1395 = vmatprep.subr.mxu0 0.0
        %1396 = vmatpush1.msra.mxu0 0.0
        %1397 = vmatprep.subr.mxu0 0.0
        %1398 = vmatpush1.msra.mxu0 0.0
        %1399 = vmatprep.subr.mxu0 0.0
        %1400 = vmatpush1.msra.mxu0 0.0
        %1401 = vmatprep.subr.mxu0 0.0
        %1402 = vmatpush1.msra.mxu0 0.0
        %1403 = vmatprep.subr.mxu0 0.0
        %1404 = vmatpush1.msra.mxu0 0.0
        %1405 = vmatprep.subr.mxu0 0.0
        %1406 = vmatpush1.msra.mxu0 0.0
        %1407 = vmatprep.subr.mxu0 0.0
        %1408 = vmatpush1.msra.mxu0 0.0
        %1409 = vmatprep.subr.mxu0 0.0
        %1410 = vmatpush1.msra.mxu0 0.0
        %1411 = vmatprep.subr.mxu0 0.0
        %1412 = vmatpush1.msra.mxu0 0.0
        %1413 = vmatprep.subr.mxu0 0.0
        %1414 = vmatpush1.msra.mxu0 0.0
        %1415 = vmatprep.subr.mxu0 0.0
        %1416 = vmatpush1.msra.mxu0 0.0
        %1417 = vmatprep.subr.mxu0 0.0
        %1418 = vmatpush1.msra.mxu0 0.0
        %1419 = vmatprep.subr.mxu0 0.0
        %1420 = vmatpush1.msra.mxu0 0.0
        %1421 = vmatprep.subr.mxu0 0.0
        %1422 = vmatpush1.msra.mxu0 0.0
        %1423 = vmatprep.subr.mxu0 0.0
        %1424 = vmatpush1.msra.mxu0 0.0
        %1425 = vmatprep.subr.mxu0 0.0
        %1426 = vmatpush1.msra.mxu0 0.0
        %1427 = vmatprep.subr.mxu0 0.0
        %1428 = vmatpush1.msra.mxu0 0.0
        %1429 = vmatprep.subr.mxu0 0.0
        %1430 = vmatpush1.msra.mxu0 0.0
        %1431 = vmatprep.subr.mxu0 0.0
        %1432 = vmatpush1.msra.mxu0 0.0
        %1433 = vmatprep.subr.mxu0 0.0
        %1434 = vmatpush1.msra.mxu0 0.0
        %1435 = vmatprep.subr.mxu0 0.0
        %1436 = vmatpush1.msra.mxu0 0.0
        %1437 = vmatprep.subr.mxu0 0.0
        %1438 = vmatpush1.msra.mxu0 0.0
        %1439 = vmatprep.subr.mxu0 0.0
        %1440 = vmatpush1.msra.mxu0 0.0
        %1441 = vmatprep.subr.mxu0 0.0
        %1442 = vmatpush1.msra.mxu0 0.0
        %1443 = vmatprep.subr.mxu0 0.0
        %1444 = vmatpush1.msra.mxu0 0.0
        %1445 = vmatprep.mubr.f32.mxu0 0.0
        %1446 = vmatmul.mubr.f32.gmra.mrb[0].mxu0 %v1379
        %v1447 = vpop.f32.mrb[0].mxu0
        %v1448 = vadd.f32 0.0, %v1447
        %v1449 = vpop.f32.mrb[0].mxu0
        %1450 = vdwg.mxu0
        %v1452 = vsel %vm842, %v1211, 0
        %1454 = vmatprep.subr.mxu0 0.0
        %1455 = vmatpush1.msra.mxu0 %v871
        %1456 = vmatprep.subr.mxu0 0.0
        %1457 = vmatpush1.msra.mxu0 0.0
        %1458 = vmatprep.subr.mxu0 0.0
        %1459 = vmatpush1.msra.mxu0 0.0
        %1460 = vmatprep.subr.mxu0 0.0
        %1461 = vmatpush1.msra.mxu0 0.0
        %1462 = vmatprep.subr.mxu0 0.0
        %1463 = vmatpush1.msra.mxu0 0.0
        %1464 = vmatprep.subr.mxu0 0.0
        %1465 = vmatpush1.msra.mxu0 0.0
        %1466 = vmatprep.subr.mxu0 0.0
        %1467 = vmatpush1.msra.mxu0 0.0
        %1468 = vmatprep.subr.mxu0 0.0
        %1469 = vmatpush1.msra.mxu0 0.0
        %1470 = vmatprep.subr.mxu0 0.0
        %1471 = vmatpush1.msra.mxu0 0.0
        %1472 = vmatprep.subr.mxu0 0.0
        %1473 = vmatpush1.msra.mxu0 0.0
        %1474 = vmatprep.subr.mxu0 0.0
        %1475 = vmatpush1.msra.mxu0 0.0
        %1476 = vmatprep.subr.mxu0 0.0
        %1477 = vmatpush1.msra.mxu0 0.0
        %1478 = vmatprep.subr.mxu0 0.0
        %1479 = vmatpush1.msra.mxu0 0.0
        %1480 = vmatprep.subr.mxu0 0.0
        %1481 = vmatpush1.msra.mxu0 0.0
        %1482 = vmatprep.subr.mxu0 0.0
        %1483 = vmatpush1.msra.mxu0 0.0
        %1484 = vmatprep.subr.mxu0 0.0
        %1485 = vmatpush1.msra.mxu0 0.0
        %1486 = vmatprep.subr.mxu0 0.0
        %1487 = vmatpush1.msra.mxu0 0.0
        %1488 = vmatprep.subr.mxu0 0.0
        %1489 = vmatpush1.msra.mxu0 0.0
        %1490 = vmatprep.subr.mxu0 0.0
        %1491 = vmatpush1.msra.mxu0 0.0
        %1492 = vmatprep.subr.mxu0 0.0
        %1493 = vmatpush1.msra.mxu0 0.0
        %1494 = vmatprep.subr.mxu0 0.0
        %1495 = vmatpush1.msra.mxu0 0.0
        %1496 = vmatprep.subr.mxu0 0.0
        %1497 = vmatpush1.msra.mxu0 0.0
        %1498 = vmatprep.subr.mxu0 0.0
        %1499 = vmatpush1.msra.mxu0 0.0
        %1500 = vmatprep.subr.mxu0 0.0
        %1501 = vmatpush1.msra.mxu0 0.0
        %1502 = vmatprep.subr.mxu0 0.0
        %1503 = vmatpush1.msra.mxu0 0.0
        %1504 = vmatprep.subr.mxu0 0.0
        %1505 = vmatpush1.msra.mxu0 0.0
        %1506 = vmatprep.subr.mxu0 0.0
        %1507 = vmatpush1.msra.mxu0 0.0
        %1508 = vmatprep.subr.mxu0 0.0
        %1509 = vmatpush1.msra.mxu0 0.0
        %1510 = vmatprep.subr.mxu0 0.0
        %1511 = vmatpush1.msra.mxu0 0.0
        %1512 = vmatprep.subr.mxu0 0.0
        %1513 = vmatpush1.msra.mxu0 0.0
        %1514 = vmatprep.subr.mxu0 0.0
        %1515 = vmatpush1.msra.mxu0 0.0
        %1516 = vmatprep.subr.mxu0 0.0
        %1517 = vmatpush1.msra.mxu0 0.0
        %1518 = vmatprep.mubr.f32.mxu0 0.0
        %1519 = vmatmul.mubr.f32.gmra.mrb[0].mxu0 %v1452
        %v1520 = vpop.f32.mrb[0].mxu0
        %v1521 = vadd.f32 0.0, %v1520
        %v1522 = vpop.f32.mrb[0].mxu0
        %1523 = vdwg.mxu0
        %v1524 = vadd.f32 %v1212, %v1302
        %v1525 = vadd.f32 %v1213, %v1375
        %v1526 = vadd.f32 %v1214, %v1448
        %v1527 = vadd.f32 %v1215, %v1521
        %v1528 = vrcp.pop %v1228
        %v1529 = vmul.f32 %v1524, %v1528
        %v1530 = vrcp.pop %v1229
        %v1531 = vmul.f32 %v1525, %v1530
        %v1532 = vrcp.pop %v1230
        %v1533 = vmul.f32 %v1526, %v1532
        %v1534 = vrcp.pop %v1231
        %v1535 = vmul.f32 %v1527, %v1534
        %1536 = vst.msk [vmem:[#allocation5] sm:$0xff] %vm842, %v1529
        %1538 = vrot.lane.b32.xlu0 %v1531, 8
        %v1539 = vpop.permute.xlu0 %1538
        %vm1541 = vcmask 130112
        %1542 = vst.msk [vmem:[#allocation5] sm:$0xff] %vm1541, %v1539
        %1544 = vrot.lane.b32.xlu0 %v1533, 16
        %v1545 = vpop.permute.xlu0 %1544
        %vm1547 = vcmask 195712
        %1548 = vst.msk [vmem:[#allocation5] sm:$0xff] %vm1547, %v1545
        %1550 = vrot.lane.b32.xlu0 %v1535, 24
        %v1551 = vpop.permute.xlu0 %1550
        %vm1553 = vcmask 261312
        %1554 = vst.msk [vmem:[#allocation5] sm:$0xff] %vm1553, %v1551
        %v1555 = vld [vmem:[#allocation5] sm:$0xff]
        %v1556 = vld [vmem:[%s9] sm:$0xff]
        %v1557 = vld [vmem:[%s9 + $0x8] sm:$0xff]
        %v1558 = vld [vmem:[%s9 + $0x10] sm:$0xff]
        %v1559 = vld [vmem:[%s9 + $0x18] sm:$0xff]
        %v1560 = vld [vmem:[%s10] sm:$0x1]
        %v1562 = vlaneseq
        %v1563 = vshrl.u32 %v1562, 7
        %v1564 = vsub.s32 0, %v1563
        %v1565 = vrot.slane %v1560, %v1564
        %v1568 = vsel %vm768, %v1555, 0
        %1570 = vmatprep.subr.mxu0 0.0
        %1571 = vmatpush1.msra.mxu0 %v1556
        %1572 = vmatprep.subr.mxu0 0.0
        %1573 = vmatpush1.msra.mxu0 %v1557
        %1574 = vmatprep.subr.mxu0 0.0
        %1575 = vmatpush1.msra.mxu0 %v1558
        %1576 = vmatprep.subr.mxu0 0.0
        %1577 = vmatpush1.msra.mxu0 %v1559
        %1578 = vmatprep.subr.mxu0 0.0
        %1579 = vmatpush1.msra.mxu0 0.0
        %1580 = vmatprep.subr.mxu0 0.0
        %1581 = vmatpush1.msra.mxu0 0.0
        %1582 = vmatprep.subr.mxu0 0.0
        %1583 = vmatpush1.msra.mxu0 0.0
        %1584 = vmatprep.subr.mxu0 0.0
        %1585 = vmatpush1.msra.mxu0 0.0
        %1586 = vmatprep.subr.mxu0 0.0
        %1587 = vmatpush1.msra.mxu0 0.0
        %1588 = vmatprep.subr.mxu0 0.0
        %1589 = vmatpush1.msra.mxu0 0.0
        %1590 = vmatprep.subr.mxu0 0.0
        %1591 = vmatpush1.msra.mxu0 0.0
        %1592 = vmatprep.subr.mxu0 0.0
        %1593 = vmatpush1.msra.mxu0 0.0
        %1594 = vmatprep.subr.mxu0 0.0
        %1595 = vmatpush1.msra.mxu0 0.0
        %1596 = vmatprep.subr.mxu0 0.0
        %1597 = vmatpush1.msra.mxu0 0.0
        %1598 = vmatprep.subr.mxu0 0.0
        %1599 = vmatpush1.msra.mxu0 0.0
        %1600 = vmatprep.subr.mxu0 0.0
        %1601 = vmatpush1.msra.mxu0 0.0
        %1602 = vmatprep.subr.mxu0 0.0
        %1603 = vmatpush1.msra.mxu0 0.0
        %1604 = vmatprep.subr.mxu0 0.0
        %1605 = vmatpush1.msra.mxu0 0.0
        %1606 = vmatprep.subr.mxu0 0.0
        %1607 = vmatpush1.msra.mxu0 0.0
        %1608 = vmatprep.subr.mxu0 0.0
        %1609 = vmatpush1.msra.mxu0 0.0
        %1610 = vmatprep.subr.mxu0 0.0
        %1611 = vmatpush1.msra.mxu0 0.0
        %1612 = vmatprep.subr.mxu0 0.0
        %1613 = vmatpush1.msra.mxu0 0.0
        %1614 = vmatprep.subr.mxu0 0.0
        %1615 = vmatpush1.msra.mxu0 0.0
        %1616 = vmatprep.subr.mxu0 0.0
        %1617 = vmatpush1.msra.mxu0 0.0
        %1618 = vmatprep.subr.mxu0 0.0
        %1619 = vmatpush1.msra.mxu0 0.0
        %1620 = vmatprep.subr.mxu0 0.0
        %1621 = vmatpush1.msra.mxu0 0.0
        %1622 = vmatprep.subr.mxu0 0.0
        %1623 = vmatpush1.msra.mxu0 0.0
        %1624 = vmatprep.subr.mxu0 0.0
        %1625 = vmatpush1.msra.mxu0 0.0
        %1626 = vmatprep.subr.mxu0 0.0
        %1627 = vmatpush1.msra.mxu0 0.0
        %1628 = vmatprep.subr.mxu0 0.0
        %1629 = vmatpush1.msra.mxu0 0.0
        %1630 = vmatprep.subr.mxu0 0.0
        %1631 = vmatpush1.msra.mxu0 0.0
        %1632 = vmatprep.subr.mxu0 0.0
        %1633 = vmatpush1.msra.mxu0 0.0
        %1634 = vmatprep.mubr.f32.mxu0 0.0
        %1635 = vmatmul.mubr.f32.gmra.mrb[0].mxu0 %v1568
        %v1636 = vpop.f32.mrb[0].mxu0
        %v1637 = vadd.f32 %v1565, %v1636
        %v1638 = vpop.f32.mrb[0].mxu0
        %1639 = vdwg.mxu0
        %1640 = vst.msk [vmem:[%s545] sm:$0xff] %vm768, %v1637
        %s1641 = sand.u32 %s303, 1
        %s1642 = scalar_lea.sflag [#allocation8], %s1641
        %s1643 = sand.u32 %s303, 1
        %s1644 = smul.addr %s1643, 8
        %s1645 = scalar_lea.vmem [#allocation18], %s1644
        // Predicated region
        $region97: #{tpu_custom_call.1} parent=63 // pred_check
          %p1646 = pneg %p313
        $region98: #{tpu_custom_call.1} parent=63 // pred_check_branch
          %1648 = sbr.rel (%p1646) target = $region100
        $region99: #{tpu_custom_call.1} parent=63 // pred_region
          %s1650 = ssub.s32 128, 128
          %1651 = vsyncadd %s1642, %s1650
          %s1652 = sadd.s32 %s38, %s37
          %s1653 = smul.addr %s1652, 128
          %s1654 = scalar_lea.hbm %s11, %s1653
          %s1656 = sshll.u32 %s1645, 4
          %s1657 = int_to_ptr.vmem [resolvable:$true] %s1656
          %1659 = dma.vmem_to_hbm [thread:$0]  %s1657, 128, %s1654, %s1642
        $region100: #{tpu_custom_call.1} parent=63 // pred_fallthru
          _
      $region64: #{tpu_custom_call.1} parent=5 // pred_fallthru
        _
      %p1660 = scmp.le.s32.totalorder 2, %s28
      // Predicated region
      $region101: #{tpu_custom_call.1} parent=5 // pred_check
        %p1661 = pneg %p1660
      $region102: #{tpu_custom_call.1} parent=5 // pred_check_branch
        %1663 = sbr.rel (%p1661) target = $region104
      $region103: #{tpu_custom_call.1} parent=5 // pred_region
        %s1664 = ssub.s32 %s28, 2
        // Predicated region
        $region105: #{tpu_custom_call.1} parent=103 // pred_check
          %p1665 = pneg %p319
        $region106: #{tpu_custom_call.1} parent=103 // pred_check_branch
          %1667 = sbr.rel (%p1665) target = $region108
        $region107: #{tpu_custom_call.1} parent=103 // pred_region
          %s1668 = sand.u32 %s304, 1
          %s1669 = scalar_lea.sflag [#allocation8], %s1668
          %s1670 = sand.u32 %s304, 1
          %s1671 = smul.addr %s1670, 8
          %s1672 = scalar_lea.vmem [#allocation18], %s1671
          %1673 = dma.done %s1669, 128
        $region108: #{tpu_custom_call.1} parent=103 // pred_fallthru
          _
      $region104: #{tpu_custom_call.1} parent=5 // pred_fallthru
        _
    $region6: #{tpu_custom_call.1} parent=1 // loop_footer
      %s32 = sadd.s32 1, %s28
    $region7: #{tpu_custom_call.1} parent=1 // loop_footer_branch
      %27 = sbr.rel target = $region3
    $region8: #{tpu_custom_call.1} parent=1 // loop_exit
      _
    %1674 = vsyncpa [#allocation7], 1
    %s1675 = scalar_lea.sflag [#allocation7], 1
    %1676 = vsyncpa %s1675, 1
    %1677 = vsyncpa [#allocation10], 1
    %s1678 = scalar_lea.sflag [#allocation10], 1
    %1679 = vsyncpa %s1678, 1
    %1680 = vsyncpa [#allocation13], 1
    %1681 = vsyncpa [#allocation16], 1
    %1682 = vsyncpa [#allocation8], 1
    %s1683 = scalar_lea.sflag [#allocation8], 1
    %1684 = vsyncpa %s1683, 1

</llo_original>
